<compile_context>
chip_gen: v6e
topology: v6e:2x2x1
jax: 0.10.0
libtpu: 0.0.40
codegen_flags: <defaults>
</compile_context>

<pallas_src>
import functools
import math

import jax
import jax.numpy as jnp
from jax import lax
from jax.experimental import pallas as pl
from jax.experimental.pallas import tpu as pltpu


def clip_layer_kernel(x_ref,
                      ln1_g_ref, ln1_b_ref, ln2_g_ref, ln2_b_ref,
                      w_qkv_ref, b_qkv_ref, w_out_ref, b_out_ref,
                      w_fc1_ref, b_fc1_ref, w_fc2_ref, b_fc2_ref,
                      o_ref, attn_scratch,
                      *, n_head, d_embed, seq_len, batch_tile):
    D = d_embed
    S = seq_len
    dh = D // n_head
    f32 = jnp.float32
    cdt = w_qkv_ref.dtype                      # MXU input dtype (bf16)

    x = x_ref[...].astype(f32)                 # (M, D), M = batch_tile * S

    # ---------------- LayerNorm 1 ----------------
    mu = jnp.mean(x, axis=-1, keepdims=True)
    var = jnp.mean(jnp.square(x - mu), axis=-1, keepdims=True)
    xn = (x - mu) * lax.rsqrt(var + 1e-5)
    xn = xn * ln1_g_ref[0].astype(f32) + ln1_b_ref[0].astype(f32)

    # ---------------- QKV projection (all rows at once) ----------------
    qkv = jnp.dot(xn.astype(cdt), w_qkv_ref[...],
                  preferred_element_type=f32) + b_qkv_ref[0].astype(f32)
    scale = jnp.float32(1.0 / math.sqrt(dh))
    q = qkv[:, 0 * D:1 * D] * scale            # fold 1/sqrt(dh) into q once
    k = qkv[:, 1 * D:2 * D]
    v = qkv[:, 2 * D:3 * D]

    # Additive causal-mask bias, computed once (robust: no -inf arithmetic).
    row = lax.broadcasted_iota(jnp.int32, (S, S), 0)
    col = lax.broadcasted_iota(jnp.int32, (S, S), 1)
    mask_bias = jnp.where(col > row, jnp.float32(-1e30), jnp.float32(0.0))

    dn = (((1,), (1,)), ((), ()))              # contract d_head, no transpose

    # ---------------- causal self-attention ----------------
    for b in range(batch_tile):                # static, small
        qb = q[b * S:(b + 1) * S, :]
        kb = k[b * S:(b + 1) * S, :]
        vb = v[b * S:(b + 1) * S, :]
        acc = jnp.zeros((S, D), f32)
        for h in range(n_head):                # static, small
            qh = qb[:, h * dh:(h + 1) * dh].astype(cdt)
            kh = kb[:, h * dh:(h + 1) * dh].astype(cdt)
            vh = vb[:, h * dh:(h + 1) * dh].astype(cdt)
            scores = lax.dot_general(qh, kh, dn, preferred_element_type=f32)
            scores = scores + mask_bias
            scores = scores - jnp.max(scores, axis=-1, keepdims=True)
            p = jnp.exp(scores)
            inv = pl.reciprocal(jnp.sum(p, axis=-1, keepdims=True), approx=True)
            p = p * inv
            ctx = jnp.dot(p.astype(cdt), vh, preferred_element_type=f32)
            # Fuse the output projection per head (no head concat).
            acc = acc + jnp.dot(ctx.astype(cdt),
                                w_out_ref[h * dh:(h + 1) * dh, :],
                                preferred_element_type=f32)
        attn_scratch[b * S:(b + 1) * S, :] = acc

    attn = attn_scratch[...] + b_out_ref[0].astype(f32)
    h1 = attn + x                              # residual 1

    # ---------------- LayerNorm 2 ----------------
    mu2 = jnp.mean(h1, axis=-1, keepdims=True)
    var2 = jnp.mean(jnp.square(h1 - mu2), axis=-1, keepdims=True)
    hn = (h1 - mu2) * lax.rsqrt(var2 + 1e-5)
    hn = hn * ln2_g_ref[0].astype(f32) + ln2_b_ref[0].astype(f32)

    # ---------------- MLP ----------------
    # Matches the module: sigmoid(1.702*x), NOT x*sigmoid(1.702*x).
    f = jnp.dot(hn.astype(cdt), w_fc1_ref[...],
                preferred_element_type=f32) + b_fc1_ref[0].astype(f32)
    f = jax.nn.sigmoid(1.702 * f)
    f = jnp.dot(f.astype(cdt), w_fc2_ref[...],
                preferred_element_type=f32) + b_fc2_ref[0].astype(f32)

    o_ref[...] = (f + h1).astype(o_ref.dtype)  # residual 2


def _pick_batch_tile(B, S):
    """Largest-M divisor of B that fills the MXU M dim, preferring >=2 steps."""
    divisors = [d for d in range(1, B + 1) if B % d == 0]

    def goodness(d):
        m = d * S
        steps = B // d
        return (m >= 256, steps >= 2, -abs(m - 256))

    return max(divisors, key=goodness)


def clip_layer(x, params, n_head, *, batch_tile=None,
               weights_dtype=jnp.bfloat16):
    B, S, D = x.shape
    assert D % n_head == 0

    (ln1_g, ln1_b, ln2_g, ln2_b,
     w_qkv, b_qkv, w_out, b_out,
     w_fc1, b_fc1, w_fc2, b_fc2) = params
    # Weight matrices in bf16 for the MXU; biases / LN params stay f32.
    params = (ln1_g, ln1_b, ln2_g, ln2_b,
              w_qkv.astype(weights_dtype), b_qkv,
              w_out.astype(weights_dtype), b_out,
              w_fc1.astype(weights_dtype), b_fc1,
              w_fc2.astype(weights_dtype), b_fc2)

    if batch_tile is None:
        batch_tile = _pick_batch_tile(B, S)
    assert B % batch_tile == 0
    m_tile = batch_tile * S
    grid = (B // batch_tile,)

    x2 = x.reshape(B * S, D)

    kernel = functools.partial(clip_layer_kernel, n_head=n_head, d_embed=D,
                               seq_len=S, batch_tile=batch_tile)

    def const_spec(shape):
        n = len(shape)
        return pl.BlockSpec(shape, lambda i, _n=n: (0,) * _n)

    in_specs = ([pl.BlockSpec((m_tile, D), lambda i: (i, 0))] +
                [const_spec(p.shape) for p in params])
    out_specs = pl.BlockSpec((m_tile, D), lambda i: (i, 0))

    # VMEM budget: weights (double-buffered by the pipeline) + x/out blocks
    # (double-buffered) + f32 activation temps + scratch, with headroom.
    def nbytes(a):
        return int(a.size) * a.dtype.itemsize

    est = 2 * sum(nbytes(p) for p in params)
    est += 2 * 2 * m_tile * D * x.dtype.itemsize
    est += 24 * m_tile * D * 4
    vmem_limit = int(min(100 * 2 ** 20, max(32 * 2 ** 20, 2 * est)))

    out2 = pl.pallas_call(
        kernel,
        out_shape=jax.ShapeDtypeStruct((B * S, D), x.dtype),
        grid_spec=pltpu.PrefetchScalarGridSpec(
            num_scalar_prefetch=0,
            grid=grid,
            in_specs=in_specs,
            out_specs=out_specs,
            scratch_shapes=[pltpu.VMEM((m_tile, D), jnp.float32)],
        ),
        compiler_params=pltpu.CompilerParams(
            dimension_semantics=("parallel",),
            vmem_limit_bytes=vmem_limit),
    )(x2, *params)
    return out2.reshape(B, S, D)


def reference(x, params, n_head, *, weights_dtype=jnp.bfloat16):
    """Pure-JAX reference with the same bf16-weight / f32-accumulate recipe."""
    (ln1_g, ln1_b, ln2_g, ln2_b,
     w_qkv, b_qkv, w_out, b_out,
     w_fc1, b_fc1, w_fc2, b_fc2) = params
    B, S, D = x.shape
    dh = D // n_head
    cdt = weights_dtype
    f32 = jnp.float32

    def ln(v, g, b):
        mu = jnp.mean(v, -1, keepdims=True)
        var = jnp.mean(jnp.square(v - mu), -1, keepdims=True)
        return (v - mu) * lax.rsqrt(var + 1e-5) * g + b

    x = x.astype(f32)
    xn = ln(x, ln1_g, ln1_b)
    qkv = jnp.dot(xn.astype(cdt), w_qkv.astype(cdt),
                  preferred_element_type=f32) + b_qkv
    q, k, v = jnp.split(qkv, 3, axis=-1)

    def split_heads(t):
        return t.reshape(B, S, n_head, dh).transpose(0, 2, 1, 3)

    q, k, v = split_heads(q), split_heads(k), split_heads(v)
    scores = jnp.einsum('bhqd,bhkd->bhqk', q.astype(cdt), k.astype(cdt),
                        preferred_element_type=f32) / math.sqrt(dh)
    mask = jnp.triu(jnp.ones((S, S), bool), 1)
    scores = jnp.where(mask, -jnp.inf, scores)
    p = jax.nn.softmax(scores, axis=-1)
    ctx = jnp.einsum('bhqk,bhkd->bhqd', p.astype(cdt), v.astype(cdt),
                     preferred_element_type=f32)
    attn = ctx.transpose(0, 2, 1, 3).reshape(B, S, D)
    attn = jnp.dot(attn.astype(cdt), w_out.astype(cdt),
                   preferred_element_type=f32) + b_out
    h1 = attn + x
    hn = ln(h1, ln2_g, ln2_b)
    f = jnp.dot(hn.astype(cdt), w_fc1.astype(cdt),
                preferred_element_type=f32) + b_fc1
    f = jax.nn.sigmoid(1.702 * f)
    f = jnp.dot(f.astype(cdt), w_fc2.astype(cdt),
                preferred_element_type=f32) + b_fc2
    return f + h1


if __name__ == "__main__":
    B, S, D, n_head = 2, 8, 32, 4

    key = jax.random.PRNGKey(0)
    ks = jax.random.split(key, 13)

    def rnd(k, shape, scale=0.02):
        return (scale * jax.random.normal(k, shape)).astype(jnp.float32)

    params = (
        jnp.ones((1, D), jnp.float32) + rnd(ks[0], (1, D)),   # ln1 gamma
        rnd(ks[1], (1, D)),                                    # ln1 beta
        jnp.ones((1, D), jnp.float32) + rnd(ks[2], (1, D)),   # ln2 gamma
        rnd(ks[3], (1, D)),                                    # ln2 beta
        rnd(ks[4], (D, 3 * D)),                                # in_proj W
        rnd(ks[5], (1, 3 * D)),                                # in_proj b
        rnd(ks[6], (D, D)),                                    # out_proj W
        rnd(ks[7], (1, D)),                                    # out_proj b
        rnd(ks[8], (D, 4 * D)),                                # linear1 W
        rnd(ks[9], (1, 4 * D)),                                # linear1 b
        rnd(ks[10], (4 * D, D)),                               # linear2 W
        rnd(ks[11], (1, D)),                                   # linear2 b
    )
    x = jax.random.normal(ks[12], (B, S, D), jnp.float32)

    out = jax.block_until_ready(clip_layer(x, params, n_head))
    ref = reference(x, params, n_head)

    assert out.shape == (B, S, D)
    max_err = float(jnp.max(jnp.abs(out - ref)))
    assert jnp.allclose(out, ref, atol=2e-3, rtol=2e-3), f"max abs err {max_err}"
    print("KERNEL_OK")
</pallas_src>

<mosaic_0001>
module attributes {stable_mosaic.version = 11 : i64} {
  func.func @clip_layer_kernel(%arg0: i32, %arg1: memref<8x32xf32, #tpu.memory_space<vmem>>, %arg2: memref<1x32xf32, #tpu.memory_space<vmem>>, %arg3: memref<1x32xf32, #tpu.memory_space<vmem>>, %arg4: memref<1x32xf32, #tpu.memory_space<vmem>>, %arg5: memref<1x32xf32, #tpu.memory_space<vmem>>, %arg6: memref<32x96xbf16, #tpu.memory_space<vmem>>, %arg7: memref<1x96xf32, #tpu.memory_space<vmem>>, %arg8: memref<32x32xbf16, #tpu.memory_space<vmem>>, %arg9: memref<1x32xf32, #tpu.memory_space<vmem>>, %arg10: memref<32x128xbf16, #tpu.memory_space<vmem>>, %arg11: memref<1x128xf32, #tpu.memory_space<vmem>>, %arg12: memref<128x32xbf16, #tpu.memory_space<vmem>>, %arg13: memref<1x32xf32, #tpu.memory_space<vmem>>, %arg14: memref<8x32xf32, #tpu.memory_space<vmem>>, %arg15: memref<8x32xf32, #tpu.memory_space<vmem>>) attributes {dimension_semantics = [#tpu.dimension_semantics<parallel>], iteration_bounds = array<i64: 2>, scalar_prefetch = 0 : i64, scratch_operands = 1 : i64, tpu.core_type = #tpu.core_type<tc>, window_params = [{transform_indices = @transform_0, window_bounds = array<i64: 8, 32>}, {pipeline_mode = #tpu.pipeline_mode<synchronous>, transform_indices = @transform_1, window_bounds = array<i64: 1, 32>}, {pipeline_mode = #tpu.pipeline_mode<synchronous>, transform_indices = @transform_2, window_bounds = array<i64: 1, 32>}, {pipeline_mode = #tpu.pipeline_mode<synchronous>, transform_indices = @transform_3, window_bounds = array<i64: 1, 32>}, {pipeline_mode = #tpu.pipeline_mode<synchronous>, transform_indices = @transform_4, window_bounds = array<i64: 1, 32>}, {pipeline_mode = #tpu.pipeline_mode<synchronous>, transform_indices = @transform_5, window_bounds = array<i64: 32, 96>}, {pipeline_mode = #tpu.pipeline_mode<synchronous>, transform_indices = @transform_6, window_bounds = array<i64: 1, 96>}, {pipeline_mode = #tpu.pipeline_mode<synchronous>, transform_indices = @transform_7, window_bounds = array<i64: 32, 32>}, {pipeline_mode = #tpu.pipeline_mode<synchronous>, transform_indices = @transform_8, window_bounds = array<i64: 1, 32>}, {pipeline_mode = #tpu.pipeline_mode<synchronous>, transform_indices = @transform_9, window_bounds = array<i64: 32, 128>}, {pipeline_mode = #tpu.pipeline_mode<synchronous>, transform_indices = @transform_10, window_bounds = array<i64: 1, 128>}, {pipeline_mode = #tpu.pipeline_mode<synchronous>, transform_indices = @transform_11, window_bounds = array<i64: 128, 32>}, {pipeline_mode = #tpu.pipeline_mode<synchronous>, transform_indices = @transform_12, window_bounds = array<i64: 1, 32>}, {transform_indices = @transform_13, window_bounds = array<i64: 8, 32>}]} {
    %c0 = arith.constant 0 : index
    %c0_0 = arith.constant 0 : index
    %0 = vector.load %arg1[%c0, %c0_0] : memref<8x32xf32, #tpu.memory_space<vmem>>, vector<8x32xf32>
    %cst = arith.constant dense<0.000000e+00> : vector<8xf32>
    %1 = vector.multi_reduction <add>, %0, %cst [1] : vector<8x32xf32> to vector<8xf32>
    %2 = vector.shape_cast %1 : vector<8xf32> to vector<8x1xf32>
    %cst_1 = arith.constant 3.200000e+01 : f32
    %3 = vector.broadcast %cst_1 : f32 to vector<8x1xf32>
    %4 = arith.divf %2, %3 : vector<8x1xf32>
    %5 = vector.broadcast %4 : vector<8x1xf32> to vector<8x32xf32>
    %6 = arith.subf %0, %5 : vector<8x32xf32>
    %7 = arith.mulf %6, %6 : vector<8x32xf32>
    %cst_2 = arith.constant dense<0.000000e+00> : vector<8xf32>
    %8 = vector.multi_reduction <add>, %7, %cst_2 [1] : vector<8x32xf32> to vector<8xf32>
    %9 = vector.shape_cast %8 : vector<8xf32> to vector<8x1xf32>
    %cst_3 = arith.constant 3.200000e+01 : f32
    %10 = vector.broadcast %cst_3 : f32 to vector<8x1xf32>
    %11 = arith.divf %9, %10 : vector<8x1xf32>
    %12 = vector.broadcast %4 : vector<8x1xf32> to vector<8x32xf32>
    %13 = arith.subf %0, %12 : vector<8x32xf32>
    %cst_4 = arith.constant 9.99999974E-6 : f32
    %14 = vector.broadcast %cst_4 : f32 to vector<8x1xf32>
    %15 = arith.addf %11, %14 : vector<8x1xf32>
    %16 = math.rsqrt %15 : vector<8x1xf32>
    %17 = vector.broadcast %16 : vector<8x1xf32> to vector<8x32xf32>
    %18 = arith.mulf %13, %17 : vector<8x32xf32>
    %c0_5 = arith.constant 0 : index
    %c0_6 = arith.constant 0 : index
    %19 = vector.load %arg2[%c0_5, %c0_6] : memref<1x32xf32, #tpu.memory_space<vmem>>, vector<1x32xf32>
    %20 = vector.shape_cast %19 : vector<1x32xf32> to vector<32xf32>
    %21 = vector.shape_cast %20 : vector<32xf32> to vector<1x32xf32>
    %22 = vector.broadcast %21 : vector<1x32xf32> to vector<8x32xf32>
    %23 = arith.mulf %18, %22 : vector<8x32xf32>
    %c0_7 = arith.constant 0 : index
    %c0_8 = arith.constant 0 : index
    %24 = vector.load %arg3[%c0_7, %c0_8] : memref<1x32xf32, #tpu.memory_space<vmem>>, vector<1x32xf32>
    %25 = vector.shape_cast %24 : vector<1x32xf32> to vector<32xf32>
    %26 = vector.shape_cast %25 : vector<32xf32> to vector<1x32xf32>
    %27 = vector.broadcast %26 : vector<1x32xf32> to vector<8x32xf32>
    %28 = arith.addf %23, %27 : vector<8x32xf32>
    %29 = arith.truncf %28 : vector<8x32xf32> to vector<8x32xbf16>
    %c0_9 = arith.constant 0 : index
    %c0_10 = arith.constant 0 : index
    %30 = vector.load %arg6[%c0_9, %c0_10] : memref<32x96xbf16, #tpu.memory_space<vmem>>, vector<32x96xbf16>
    %cst_11 = arith.constant dense<0.000000e+00> : vector<8x96xf32>
    %31 = tpu.matmul %29, %30, %cst_11 {dimension_numbers = #tpu.dot_dimension_numbers<[1], [0], [0], [1], [0, 0, 1, 1], [], []>} : vector<8x32xbf16>, vector<32x96xbf16>, vector<8x96xf32> -> vector<8x96xf32>
    %c0_12 = arith.constant 0 : index
    %c0_13 = arith.constant 0 : index
    %32 = vector.load %arg7[%c0_12, %c0_13] : memref<1x96xf32, #tpu.memory_space<vmem>>, vector<1x96xf32>
    %33 = vector.shape_cast %32 : vector<1x96xf32> to vector<96xf32>
    %34 = vector.shape_cast %33 : vector<96xf32> to vector<1x96xf32>
    %35 = vector.broadcast %34 : vector<1x96xf32> to vector<8x96xf32>
    %36 = arith.addf %31, %35 : vector<8x96xf32>
    %37 = vector.extract_strided_slice %36 {offsets = [0, 0], sizes = [8, 32], strides = [1, 1]} : vector<8x96xf32> to vector<8x32xf32>
    %cst_14 = arith.constant 0.353553385 : f32
    %38 = vector.broadcast %cst_14 : f32 to vector<8x32xf32>
    %39 = arith.mulf %37, %38 : vector<8x32xf32>
    %40 = vector.extract_strided_slice %36 {offsets = [0, 32], sizes = [8, 32], strides = [1, 1]} : vector<8x96xf32> to vector<8x32xf32>
    %41 = vector.extract_strided_slice %36 {offsets = [0, 64], sizes = [8, 32], strides = [1, 1]} : vector<8x96xf32> to vector<8x32xf32>
    %42 = tpu.iota {dimensions = array<i32: 0>} : vector<8x8xi32>
    %43 = tpu.iota {dimensions = array<i32: 1>} : vector<8x8xi32>
    %44 = arith.cmpi sgt, %43, %42 : vector<8x8xi32>
    %cst_15 = arith.constant -1.000000e+30 : f32
    %cst_16 = arith.constant 0.000000e+00 : f32
    %45 = vector.broadcast %cst_15 : f32 to vector<8x8xf32>
    %46 = vector.broadcast %cst_16 : f32 to vector<8x8xf32>
    %47 = arith.select %44, %45, %46 : vector<8x8xi1>, vector<8x8xf32>
    %cst_17 = arith.constant 0.000000e+00 : f32
    %48 = vector.broadcast %cst_17 : f32 to vector<8x32xf32>
    %49 = vector.extract_strided_slice %39 {offsets = [0, 0], sizes = [8, 8], strides = [1, 1]} : vector<8x32xf32> to vector<8x8xf32>
    %50 = arith.truncf %49 : vector<8x8xf32> to vector<8x8xbf16>
    %51 = vector.extract_strided_slice %40 {offsets = [0, 0], sizes = [8, 8], strides = [1, 1]} : vector<8x32xf32> to vector<8x8xf32>
    %52 = arith.truncf %51 : vector<8x8xf32> to vector<8x8xbf16>
    %53 = vector.extract_strided_slice %41 {offsets = [0, 0], sizes = [8, 8], strides = [1, 1]} : vector<8x32xf32> to vector<8x8xf32>
    %54 = arith.truncf %53 : vector<8x8xf32> to vector<8x8xbf16>
    %cst_18 = arith.constant dense<0.000000e+00> : vector<8x8xf32>
    %55 = tpu.matmul %50, %52, %cst_18 {dimension_numbers = #tpu.dot_dimension_numbers<[1], [1], [0], [0], [0, 0, 1, 0], [], []>} : vector<8x8xbf16>, vector<8x8xbf16>, vector<8x8xf32> -> vector<8x8xf32>
    %56 = arith.addf %55, %47 : vector<8x8xf32>
    %cst_19 = arith.constant dense<0xFF800000> : vector<8xf32>
    %57 = vector.multi_reduction <maximumf>, %56, %cst_19 [1] : vector<8x8xf32> to vector<8xf32>
    %58 = vector.shape_cast %57 : vector<8xf32> to vector<8x1xf32>
    %59 = vector.broadcast %58 : vector<8x1xf32> to vector<8x8xf32>
    %60 = arith.subf %56, %59 : vector<8x8xf32>
    %61 = math.exp %60 : vector<8x8xf32>
    %cst_20 = arith.constant dense<0.000000e+00> : vector<8xf32>
    %62 = vector.multi_reduction <add>, %61, %cst_20 [1] : vector<8x8xf32> to vector<8xf32>
    %63 = vector.shape_cast %62 : vector<8xf32> to vector<8x1xf32>
    %64 = tpu.reciprocal %63 {approx = true} : vector<8x1xf32> -> vector<8x1xf32>
    %65 = vector.broadcast %64 : vector<8x1xf32> to vector<8x8xf32>
    %66 = arith.mulf %61, %65 : vector<8x8xf32>
    %67 = arith.truncf %66 : vector<8x8xf32> to vector<8x8xbf16>
    %cst_21 = arith.constant dense<0.000000e+00> : vector<8x8xf32>
    %68 = tpu.matmul %67, %54, %cst_21 {dimension_numbers = #tpu.dot_dimension_numbers<[1], [0], [0], [1], [0, 0, 1, 1], [], []>} : vector<8x8xbf16>, vector<8x8xbf16>, vector<8x8xf32> -> vector<8x8xf32>
    %69 = arith.truncf %68 : vector<8x8xf32> to vector<8x8xbf16>
    %c0_22 = arith.constant 0 : index
    %c0_23 = arith.constant 0 : index
    %70 = vector.load %arg8[%c0_22, %c0_23] : memref<32x32xbf16, #tpu.memory_space<vmem>>, vector<8x32xbf16>
    %cst_24 = arith.constant dense<0.000000e+00> : vector<8x32xf32>
    %71 = tpu.matmul %69, %70, %cst_24 {dimension_numbers = #tpu.dot_dimension_numbers<[1], [0], [0], [1], [0, 0, 1, 1], [], []>} : vector<8x8xbf16>, vector<8x32xbf16>, vector<8x32xf32> -> vector<8x32xf32>
    %72 = arith.addf %48, %71 : vector<8x32xf32>
    %73 = vector.extract_strided_slice %39 {offsets = [0, 8], sizes = [8, 8], strides = [1, 1]} : vector<8x32xf32> to vector<8x8xf32>
    %74 = arith.truncf %73 : vector<8x8xf32> to vector<8x8xbf16>
    %75 = vector.extract_strided_slice %40 {offsets = [0, 8], sizes = [8, 8], strides = [1, 1]} : vector<8x32xf32> to vector<8x8xf32>
    %76 = arith.truncf %75 : vector<8x8xf32> to vector<8x8xbf16>
    %77 = vector.extract_strided_slice %41 {offsets = [0, 8], sizes = [8, 8], strides = [1, 1]} : vector<8x32xf32> to vector<8x8xf32>
    %78 = arith.truncf %77 : vector<8x8xf32> to vector<8x8xbf16>
    %cst_25 = arith.constant dense<0.000000e+00> : vector<8x8xf32>
    %79 = tpu.matmul %74, %76, %cst_25 {dimension_numbers = #tpu.dot_dimension_numbers<[1], [1], [0], [0], [0, 0, 1, 0], [], []>} : vector<8x8xbf16>, vector<8x8xbf16>, vector<8x8xf32> -> vector<8x8xf32>
    %80 = arith.addf %79, %47 : vector<8x8xf32>
    %cst_26 = arith.constant dense<0xFF800000> : vector<8xf32>
    %81 = vector.multi_reduction <maximumf>, %80, %cst_26 [1] : vector<8x8xf32> to vector<8xf32>
    %82 = vector.shape_cast %81 : vector<8xf32> to vector<8x1xf32>
    %83 = vector.broadcast %82 : vector<8x1xf32> to vector<8x8xf32>
    %84 = arith.subf %80, %83 : vector<8x8xf32>
    %85 = math.exp %84 : vector<8x8xf32>
    %cst_27 = arith.constant dense<0.000000e+00> : vector<8xf32>
    %86 = vector.multi_reduction <add>, %85, %cst_27 [1] : vector<8x8xf32> to vector<8xf32>
    %87 = vector.shape_cast %86 : vector<8xf32> to vector<8x1xf32>
    %88 = tpu.reciprocal %87 {approx = true} : vector<8x1xf32> -> vector<8x1xf32>
    %89 = vector.broadcast %88 : vector<8x1xf32> to vector<8x8xf32>
    %90 = arith.mulf %85, %89 : vector<8x8xf32>
    %91 = arith.truncf %90 : vector<8x8xf32> to vector<8x8xbf16>
    %cst_28 = arith.constant dense<0.000000e+00> : vector<8x8xf32>
    %92 = tpu.matmul %91, %78, %cst_28 {dimension_numbers = #tpu.dot_dimension_numbers<[1], [0], [0], [1], [0, 0, 1, 1], [], []>} : vector<8x8xbf16>, vector<8x8xbf16>, vector<8x8xf32> -> vector<8x8xf32>
    %93 = arith.truncf %92 : vector<8x8xf32> to vector<8x8xbf16>
    %c8 = arith.constant 8 : index
    %c0_29 = arith.constant 0 : index
    %94 = vector.load %arg8[%c8, %c0_29] : memref<32x32xbf16, #tpu.memory_space<vmem>>, vector<8x32xbf16>
    %cst_30 = arith.constant dense<0.000000e+00> : vector<8x32xf32>
    %95 = tpu.matmul %93, %94, %cst_30 {dimension_numbers = #tpu.dot_dimension_numbers<[1], [0], [0], [1], [0, 0, 1, 1], [], []>} : vector<8x8xbf16>, vector<8x32xbf16>, vector<8x32xf32> -> vector<8x32xf32>
    %96 = arith.addf %72, %95 : vector<8x32xf32>
    %97 = vector.extract_strided_slice %39 {offsets = [0, 16], sizes = [8, 8], strides = [1, 1]} : vector<8x32xf32> to vector<8x8xf32>
    %98 = arith.truncf %97 : vector<8x8xf32> to vector<8x8xbf16>
    %99 = vector.extract_strided_slice %40 {offsets = [0, 16], sizes = [8, 8], strides = [1, 1]} : vector<8x32xf32> to vector<8x8xf32>
    %100 = arith.truncf %99 : vector<8x8xf32> to vector<8x8xbf16>
    %101 = vector.extract_strided_slice %41 {offsets = [0, 16], sizes = [8, 8], strides = [1, 1]} : vector<8x32xf32> to vector<8x8xf32>
    %102 = arith.truncf %101 : vector<8x8xf32> to vector<8x8xbf16>
    %cst_31 = arith.constant dense<0.000000e+00> : vector<8x8xf32>
    %103 = tpu.matmul %98, %100, %cst_31 {dimension_numbers = #tpu.dot_dimension_numbers<[1], [1], [0], [0], [0, 0, 1, 0], [], []>} : vector<8x8xbf16>, vector<8x8xbf16>, vector<8x8xf32> -> vector<8x8xf32>
    %104 = arith.addf %103, %47 : vector<8x8xf32>
    %cst_32 = arith.constant dense<0xFF800000> : vector<8xf32>
    %105 = vector.multi_reduction <maximumf>, %104, %cst_32 [1] : vector<8x8xf32> to vector<8xf32>
    %106 = vector.shape_cast %105 : vector<8xf32> to vector<8x1xf32>
    %107 = vector.broadcast %106 : vector<8x1xf32> to vector<8x8xf32>
    %108 = arith.subf %104, %107 : vector<8x8xf32>
    %109 = math.exp %108 : vector<8x8xf32>
    %cst_33 = arith.constant dense<0.000000e+00> : vector<8xf32>
    %110 = vector.multi_reduction <add>, %109, %cst_33 [1] : vector<8x8xf32> to vector<8xf32>
    %111 = vector.shape_cast %110 : vector<8xf32> to vector<8x1xf32>
    %112 = tpu.reciprocal %111 {approx = true} : vector<8x1xf32> -> vector<8x1xf32>
    %113 = vector.broadcast %112 : vector<8x1xf32> to vector<8x8xf32>
    %114 = arith.mulf %109, %113 : vector<8x8xf32>
    %115 = arith.truncf %114 : vector<8x8xf32> to vector<8x8xbf16>
    %cst_34 = arith.constant dense<0.000000e+00> : vector<8x8xf32>
    %116 = tpu.matmul %115, %102, %cst_34 {dimension_numbers = #tpu.dot_dimension_numbers<[1], [0], [0], [1], [0, 0, 1, 1], [], []>} : vector<8x8xbf16>, vector<8x8xbf16>, vector<8x8xf32> -> vector<8x8xf32>
    %117 = arith.truncf %116 : vector<8x8xf32> to vector<8x8xbf16>
    %c16 = arith.constant 16 : index
    %c0_35 = arith.constant 0 : index
    %118 = vector.load %arg8[%c16, %c0_35] : memref<32x32xbf16, #tpu.memory_space<vmem>>, vector<8x32xbf16>
    %cst_36 = arith.constant dense<0.000000e+00> : vector<8x32xf32>
    %119 = tpu.matmul %117, %118, %cst_36 {dimension_numbers = #tpu.dot_dimension_numbers<[1], [0], [0], [1], [0, 0, 1, 1], [], []>} : vector<8x8xbf16>, vector<8x32xbf16>, vector<8x32xf32> -> vector<8x32xf32>
    %120 = arith.addf %96, %119 : vector<8x32xf32>
    %121 = vector.extract_strided_slice %39 {offsets = [0, 24], sizes = [8, 8], strides = [1, 1]} : vector<8x32xf32> to vector<8x8xf32>
    %122 = arith.truncf %121 : vector<8x8xf32> to vector<8x8xbf16>
    %123 = vector.extract_strided_slice %40 {offsets = [0, 24], sizes = [8, 8], strides = [1, 1]} : vector<8x32xf32> to vector<8x8xf32>
    %124 = arith.truncf %123 : vector<8x8xf32> to vector<8x8xbf16>
    %125 = vector.extract_strided_slice %41 {offsets = [0, 24], sizes = [8, 8], strides = [1, 1]} : vector<8x32xf32> to vector<8x8xf32>
    %126 = arith.truncf %125 : vector<8x8xf32> to vector<8x8xbf16>
    %cst_37 = arith.constant dense<0.000000e+00> : vector<8x8xf32>
    %127 = tpu.matmul %122, %124, %cst_37 {dimension_numbers = #tpu.dot_dimension_numbers<[1], [1], [0], [0], [0, 0, 1, 0], [], []>} : vector<8x8xbf16>, vector<8x8xbf16>, vector<8x8xf32> -> vector<8x8xf32>
    %128 = arith.addf %127, %47 : vector<8x8xf32>
    %cst_38 = arith.constant dense<0xFF800000> : vector<8xf32>
    %129 = vector.multi_reduction <maximumf>, %128, %cst_38 [1] : vector<8x8xf32> to vector<8xf32>
    %130 = vector.shape_cast %129 : vector<8xf32> to vector<8x1xf32>
    %131 = vector.broadcast %130 : vector<8x1xf32> to vector<8x8xf32>
    %132 = arith.subf %128, %131 : vector<8x8xf32>
    %133 = math.exp %132 : vector<8x8xf32>
    %cst_39 = arith.constant dense<0.000000e+00> : vector<8xf32>
    %134 = vector.multi_reduction <add>, %133, %cst_39 [1] : vector<8x8xf32> to vector<8xf32>
    %135 = vector.shape_cast %134 : vector<8xf32> to vector<8x1xf32>
    %136 = tpu.reciprocal %135 {approx = true} : vector<8x1xf32> -> vector<8x1xf32>
    %137 = vector.broadcast %136 : vector<8x1xf32> to vector<8x8xf32>
    %138 = arith.mulf %133, %137 : vector<8x8xf32>
    %139 = arith.truncf %138 : vector<8x8xf32> to vector<8x8xbf16>
    %cst_40 = arith.constant dense<0.000000e+00> : vector<8x8xf32>
    %140 = tpu.matmul %139, %126, %cst_40 {dimension_numbers = #tpu.dot_dimension_numbers<[1], [0], [0], [1], [0, 0, 1, 1], [], []>} : vector<8x8xbf16>, vector<8x8xbf16>, vector<8x8xf32> -> vector<8x8xf32>
    %141 = arith.truncf %140 : vector<8x8xf32> to vector<8x8xbf16>
    %c24 = arith.constant 24 : index
    %c0_41 = arith.constant 0 : index
    %142 = vector.load %arg8[%c24, %c0_41] : memref<32x32xbf16, #tpu.memory_space<vmem>>, vector<8x32xbf16>
    %cst_42 = arith.constant dense<0.000000e+00> : vector<8x32xf32>
    %143 = tpu.matmul %141, %142, %cst_42 {dimension_numbers = #tpu.dot_dimension_numbers<[1], [0], [0], [1], [0, 0, 1, 1], [], []>} : vector<8x8xbf16>, vector<8x32xbf16>, vector<8x32xf32> -> vector<8x32xf32>
    %144 = arith.addf %120, %143 : vector<8x32xf32>
    %c0_43 = arith.constant 0 : index
    %c0_44 = arith.constant 0 : index
    %145 = vector.load %arg15[%c0_43, %c0_44] : memref<8x32xf32, #tpu.memory_space<vmem>>, vector<8x32xf32>
    tpu.vector_store %arg15[%c0_43, %c0_44], %144 {strides = array<i32>} : memref<8x32xf32, #tpu.memory_space<vmem>>, vector<8x32xf32>,
    %c0_45 = arith.constant 0 : index
    %c0_46 = arith.constant 0 : index
    %146 = vector.load %arg15[%c0_45, %c0_46] : memref<8x32xf32, #tpu.memory_space<vmem>>, vector<8x32xf32>
    %c0_47 = arith.constant 0 : index
    %c0_48 = arith.constant 0 : index
    %147 = vector.load %arg9[%c0_47, %c0_48] : memref<1x32xf32, #tpu.memory_space<vmem>>, vector<1x32xf32>
    %148 = vector.shape_cast %147 : vector<1x32xf32> to vector<32xf32>
    %149 = vector.shape_cast %148 : vector<32xf32> to vector<1x32xf32>
    %150 = vector.broadcast %149 : vector<1x32xf32> to vector<8x32xf32>
    %151 = arith.addf %146, %150 : vector<8x32xf32>
    %152 = arith.addf %151, %0 : vector<8x32xf32>
    %cst_49 = arith.constant dense<0.000000e+00> : vector<8xf32>
    %153 = vector.multi_reduction <add>, %152, %cst_49 [1] : vector<8x32xf32> to vector<8xf32>
    %154 = vector.shape_cast %153 : vector<8xf32> to vector<8x1xf32>
    %cst_50 = arith.constant 3.200000e+01 : f32
    %155 = vector.broadcast %cst_50 : f32 to vector<8x1xf32>
    %156 = arith.divf %154, %155 : vector<8x1xf32>
    %157 = vector.broadcast %156 : vector<8x1xf32> to vector<8x32xf32>
    %158 = arith.subf %152, %157 : vector<8x32xf32>
    %159 = arith.mulf %158, %158 : vector<8x32xf32>
    %cst_51 = arith.constant dense<0.000000e+00> : vector<8xf32>
    %160 = vector.multi_reduction <add>, %159, %cst_51 [1] : vector<8x32xf32> to vector<8xf32>
    %161 = vector.shape_cast %160 : vector<8xf32> to vector<8x1xf32>
    %cst_52 = arith.constant 3.200000e+01 : f32
    %162 = vector.broadcast %cst_52 : f32 to vector<8x1xf32>
    %163 = arith.divf %161, %162 : vector<8x1xf32>
    %164 = vector.broadcast %156 : vector<8x1xf32> to vector<8x32xf32>
    %165 = arith.subf %152, %164 : vector<8x32xf32>
    %cst_53 = arith.constant 9.99999974E-6 : f32
    %166 = vector.broadcast %cst_53 : f32 to vector<8x1xf32>
    %167 = arith.addf %163, %166 : vector<8x1xf32>
    %168 = math.rsqrt %167 : vector<8x1xf32>
    %169 = vector.broadcast %168 : vector<8x1xf32> to vector<8x32xf32>
    %170 = arith.mulf %165, %169 : vector<8x32xf32>
    %c0_54 = arith.constant 0 : index
    %c0_55 = arith.constant 0 : index
    %171 = vector.load %arg4[%c0_54, %c0_55] : memref<1x32xf32, #tpu.memory_space<vmem>>, vector<1x32xf32>
    %172 = vector.shape_cast %171 : vector<1x32xf32> to vector<32xf32>
    %173 = vector.shape_cast %172 : vector<32xf32> to vector<1x32xf32>
    %174 = vector.broadcast %173 : vector<1x32xf32> to vector<8x32xf32>
    %175 = arith.mulf %170, %174 : vector<8x32xf32>
    %c0_56 = arith.constant 0 : index
    %c0_57 = arith.constant 0 : index
    %176 = vector.load %arg5[%c0_56, %c0_57] : memref<1x32xf32, #tpu.memory_space<vmem>>, vector<1x32xf32>
    %177 = vector.shape_cast %176 : vector<1x32xf32> to vector<32xf32>
    %178 = vector.shape_cast %177 : vector<32xf32> to vector<1x32xf32>
    %179 = vector.broadcast %178 : vector<1x32xf32> to vector<8x32xf32>
    %180 = arith.addf %175, %179 : vector<8x32xf32>
    %181 = arith.truncf %180 : vector<8x32xf32> to vector<8x32xbf16>
    %c0_58 = arith.constant 0 : index
    %c0_59 = arith.constant 0 : index
    %182 = vector.load %arg10[%c0_58, %c0_59] : memref<32x128xbf16, #tpu.memory_space<vmem>>, vector<32x128xbf16>
    %cst_60 = arith.constant dense<0.000000e+00> : vector<8x128xf32>
    %183 = tpu.matmul %181, %182, %cst_60 {dimension_numbers = #tpu.dot_dimension_numbers<[1], [0], [0], [1], [0, 0, 1, 1], [], []>} : vector<8x32xbf16>, vector<32x128xbf16>, vector<8x128xf32> -> vector<8x128xf32>
    %c0_61 = arith.constant 0 : index
    %c0_62 = arith.constant 0 : index
    %184 = vector.load %arg11[%c0_61, %c0_62] : memref<1x128xf32, #tpu.memory_space<vmem>>, vector<1x128xf32>
    %185 = vector.shape_cast %184 : vector<1x128xf32> to vector<128xf32>
    %186 = vector.shape_cast %185 : vector<128xf32> to vector<1x128xf32>
    %187 = vector.broadcast %186 : vector<1x128xf32> to vector<8x128xf32>
    %188 = arith.addf %183, %187 : vector<8x128xf32>
    %cst_63 = arith.constant 1.702000e+00 : f32
    %189 = vector.broadcast %cst_63 : f32 to vector<8x128xf32>
    %190 = arith.mulf %189, %188 : vector<8x128xf32>
    %191 = arith.negf %190 : vector<8x128xf32>
    %192 = math.exp %191 : vector<8x128xf32>
    %cst_64 = arith.constant 1.000000e+00 : f32
    %193 = vector.broadcast %cst_64 : f32 to vector<8x128xf32>
    %194 = arith.addf %193, %192 : vector<8x128xf32>
    %195 = arith.divf %193, %194 : vector<8x128xf32>
    %196 = arith.truncf %195 : vector<8x128xf32> to vector<8x128xbf16>
    %c0_65 = arith.constant 0 : index
    %c0_66 = arith.constant 0 : index
    %197 = vector.load %arg12[%c0_65, %c0_66] : memref<128x32xbf16, #tpu.memory_space<vmem>>, vector<128x32xbf16>
    %cst_67 = arith.constant dense<0.000000e+00> : vector<8x32xf32>
    %198 = tpu.matmul %196, %197, %cst_67 {dimension_numbers = #tpu.dot_dimension_numbers<[1], [0], [0], [1], [0, 0, 1, 1], [], []>} : vector<8x128xbf16>, vector<128x32xbf16>, vector<8x32xf32> -> vector<8x32xf32>
    %c0_68 = arith.constant 0 : index
    %c0_69 = arith.constant 0 : index
    %199 = vector.load %arg13[%c0_68, %c0_69] : memref<1x32xf32, #tpu.memory_space<vmem>>, vector<1x32xf32>
    %200 = vector.shape_cast %199 : vector<1x32xf32> to vector<32xf32>
    %201 = vector.shape_cast %200 : vector<32xf32> to vector<1x32xf32>
    %202 = vector.broadcast %201 : vector<1x32xf32> to vector<8x32xf32>
    %203 = arith.addf %198, %202 : vector<8x32xf32>
    %204 = arith.addf %203, %152 : vector<8x32xf32>
    %c0_70 = arith.constant 0 : index
    %c0_71 = arith.constant 0 : index
    %205 = vector.load %arg14[%c0_70, %c0_71] : memref<8x32xf32, #tpu.memory_space<vmem>>, vector<8x32xf32>
    tpu.vector_store %arg14[%c0_70, %c0_71], %204 {strides = array<i32>} : memref<8x32xf32, #tpu.memory_space<vmem>>, vector<8x32xf32>,
    return
  }
  func.func @transform_0(%arg0: i32) -> (i32, i32) {
    %c0_i32 = arith.constant 0 : i32
    %c0_i32_0 = arith.constant 0 : i32
    return %arg0, %c0_i32 : i32, i32
  }
  func.func @transform_1(%arg0: i32) -> (i32, i32) {
    %c0_i32 = arith.constant 0 : i32
    %c0_i32_0 = arith.constant 0 : i32
    %c0_i32_1 = arith.constant 0 : i32
    return %c0_i32, %c0_i32_0 : i32, i32
  }
  func.func @transform_2(%arg0: i32) -> (i32, i32) {
    %c0_i32 = arith.constant 0 : i32
    %c0_i32_0 = arith.constant 0 : i32
    %c0_i32_1 = arith.constant 0 : i32
    return %c0_i32, %c0_i32_0 : i32, i32
  }
  func.func @transform_3(%arg0: i32) -> (i32, i32) {
    %c0_i32 = arith.constant 0 : i32
    %c0_i32_0 = arith.constant 0 : i32
    %c0_i32_1 = arith.constant 0 : i32
    return %c0_i32, %c0_i32_0 : i32, i32
  }
  func.func @transform_4(%arg0: i32) -> (i32, i32) {
    %c0_i32 = arith.constant 0 : i32
    %c0_i32_0 = arith.constant 0 : i32
    %c0_i32_1 = arith.constant 0 : i32
    return %c0_i32, %c0_i32_0 : i32, i32
  }
  func.func @transform_5(%arg0: i32) -> (i32, i32) {
    %c0_i32 = arith.constant 0 : i32
    %c0_i32_0 = arith.constant 0 : i32
    %c0_i32_1 = arith.constant 0 : i32
    return %c0_i32, %c0_i32_0 : i32, i32
  }
  func.func @transform_6(%arg0: i32) -> (i32, i32) {
    %c0_i32 = arith.constant 0 : i32
    %c0_i32_0 = arith.constant 0 : i32
    %c0_i32_1 = arith.constant 0 : i32
    return %c0_i32, %c0_i32_0 : i32, i32
  }
  func.func @transform_7(%arg0: i32) -> (i32, i32) {
    %c0_i32 = arith.constant 0 : i32
    %c0_i32_0 = arith.constant 0 : i32
    %c0_i32_1 = arith.constant 0 : i32
    return %c0_i32, %c0_i32_0 : i32, i32
  }
  func.func @transform_8(%arg0: i32) -> (i32, i32) {
    %c0_i32 = arith.constant 0 : i32
    %c0_i32_0 = arith.constant 0 : i32
    %c0_i32_1 = arith.constant 0 : i32
    return %c0_i32, %c0_i32_0 : i32, i32
  }
  func.func @transform_9(%arg0: i32) -> (i32, i32) {
    %c0_i32 = arith.constant 0 : i32
    %c0_i32_0 = arith.constant 0 : i32
    %c0_i32_1 = arith.constant 0 : i32
    return %c0_i32, %c0_i32_0 : i32, i32
  }
  func.func @transform_10(%arg0: i32) -> (i32, i32) {
    %c0_i32 = arith.constant 0 : i32
    %c0_i32_0 = arith.constant 0 : i32
    %c0_i32_1 = arith.constant 0 : i32
    return %c0_i32, %c0_i32_0 : i32, i32
  }
  func.func @transform_11(%arg0: i32) -> (i32, i32) {
    %c0_i32 = arith.constant 0 : i32
    %c0_i32_0 = arith.constant 0 : i32
    %c0_i32_1 = arith.constant 0 : i32
    return %c0_i32, %c0_i32_0 : i32, i32
  }
  func.func @transform_12(%arg0: i32) -> (i32, i32) {
    %c0_i32 = arith.constant 0 : i32
    %c0_i32_0 = arith.constant 0 : i32
    %c0_i32_1 = arith.constant 0 : i32
    return %c0_i32, %c0_i32_0 : i32, i32
  }
  func.func @transform_13(%arg0: i32) -> (i32, i32) {
    %c0_i32 = arith.constant 0 : i32
    %c0_i32_0 = arith.constant 0 : i32
    return %arg0, %c0_i32 : i32, i32
  }
}

</mosaic_0001>

<llo_original>
// kernel: tpu_custom_call.1
$region0: #{tpu_custom_call.1}
  #allocation0 [shape = 'u32[]', space=smem, size = 0x4, offset = 0x4, fixed_abs, tag = 'smem constant byte address 0x4 - core index']
  #allocation1 [shape = 'u32[144,128]{1,0:T(1,128)}', space=vmem, size = 0x12000, scoped, tag = 'internal scratch']
  #allocation2 [shape = 'f32[8,32]{1,0:T(8,128)}', space=vmem, size = 0x1000, scoped, tag = 'scratch operand']
  %s0 = inlined_call_operand.vmem [shape: f32[16,32], index: 0, kind: input, shape index: {}]
  %s1 = inlined_call_operand.vmem [shape: f32[1,32], index: 1, kind: input, shape index: {}]
  %s2 = inlined_call_operand.vmem [shape: f32[1,32], index: 2, kind: input, shape index: {}]
  %s3 = inlined_call_operand.vmem [shape: f32[1,32], index: 3, kind: input, shape index: {}]
  %s4 = inlined_call_operand.vmem [shape: f32[1,32], index: 4, kind: input, shape index: {}]
  %s5 = inlined_call_operand.vmem [shape: bf16[32,96], index: 5, kind: input, shape index: {}]
  %s6 = inlined_call_operand.vmem [shape: f32[1,96], index: 6, kind: input, shape index: {}]
  %s7 = inlined_call_operand.vmem [shape: bf16[32,32], index: 7, kind: input, shape index: {}]
  %s8 = inlined_call_operand.vmem [shape: f32[1,32], index: 8, kind: input, shape index: {}]
  %s9 = inlined_call_operand.vmem [shape: bf16[32,128], index: 9, kind: input, shape index: {}]
  %s10 = inlined_call_operand.vmem [shape: f32[1,128], index: 10, kind: input, shape index: {}]
  %s11 = inlined_call_operand.vmem [shape: bf16[128,32], index: 11, kind: input, shape index: {}]
  %s12 = inlined_call_operand.vmem [shape: f32[1,32], index: 12, kind: input, shape index: {}]
  %s13 = inlined_call_operand.hbm [shape: f32[16,32], index: 13, kind: output, shape index: {}]
  %s14 = sld [smem:[#allocation0]]
  $region85: #{tpu_custom_call.1} parent=0
    _
  %s16 = ssub.s32 1, %s14
  %s17 = scalar_select 0, %s16, %s14
  $region1: #{tpu_custom_call.1} parent=0
    #allocation3 [shape = 'u8[8192]{0}', space=vmem, size = 0x2000, scoped, tag = 'output window, operand 0']
    #allocation4 [shape = 's32[2]{0}', space=sflag, size = 0x8, scoped, tag = 'scoped memory for tpu_custom_call.1']
    %18 = vsyncpa [#allocation4], 0
    %s19 = scalar_lea.sflag [#allocation4], 1
    %20 = vsyncpa %s19, 0
    loop: start=0, step=1, limit=4
    $region2: #{tpu_custom_call.1} parent=1 // loop_pre_header
      _
    $region3: #{tpu_custom_call.1} parent=1 // loop_header
      %s22 = sphi 0, %s26
      %p23 = scmp.ge.s32.totalorder %s22, 4
      %s32 = sphi 0, %s34
      %s35 = sphi 0, %s32
      %s36 = sphi 0, %s35
      %s52 = sphi 0, %s36
      %s56 = sphi 0, %s56
      %s58 = sphi 0, %s56
      %s59 = sphi 0, %s58
      %s73 = sphi 0, %s59
      %s77 = sphi 0, %s77
      %s79 = sphi 0, %s77
      %s80 = sphi 0, %s79
      %s94 = sphi 0, %s80
      %s98 = sphi 0, %s98
      %s100 = sphi 0, %s98
      %s101 = sphi 0, %s100
      %s115 = sphi 0, %s101
      %s119 = sphi 0, %s119
      %s121 = sphi 0, %s119
      %s122 = sphi 0, %s121
      %s136 = sphi 0, %s122
      %s140 = sphi 0, %s140
      %s142 = sphi 0, %s140
      %s143 = sphi 0, %s142
      %s157 = sphi 0, %s143
      %s161 = sphi 0, %s161
      %s163 = sphi 0, %s161
      %s164 = sphi 0, %s163
      %s178 = sphi 0, %s164
      %s182 = sphi 0, %s182
      %s184 = sphi 0, %s182
      %s185 = sphi 0, %s184
      %s199 = sphi 0, %s185
      %s203 = sphi 0, %s203
      %s205 = sphi 0, %s203
      %s206 = sphi 0, %s205
      %s220 = sphi 0, %s206
      %s224 = sphi 0, %s224
      %s226 = sphi 0, %s224
      %s227 = sphi 0, %s226
      %s241 = sphi 0, %s227
      %s245 = sphi 0, %s245
      %s247 = sphi 0, %s245
      %s248 = sphi 0, %s247
      %s262 = sphi 0, %s248
      %s266 = sphi 0, %s266
      %s268 = sphi 0, %s266
      %s269 = sphi 0, %s268
      %s283 = sphi 0, %s269
      %s287 = sphi 0, %s287
      %s289 = sphi 0, %s287
      %s290 = sphi 0, %s289
      %s304 = sphi 0, %s290
      %s310 = sphi 0, %s312
      %s313 = sphi 0, %s310
      %s314 = sphi 0, %s313
      %s330 = sphi 0, %s314
    $region4: #{tpu_custom_call.1} parent=1 // loop_header_branch
      %25 = sbr.rel (%p23) target = $region8
    $region5: #{tpu_custom_call.1} parent=1 // loop_body
      %s27 = ssub.s32 %s22, 1
      %s28 = ssub.s32 %s22, 2
      %s29 = sadd.s32 %s22, 1
      %s30 = ssub.s32 %s22, %s29
      %p31 = scmp.eq.s32.totalorder %s30, 0
      %s33 = sadd.s32 %s32, 1
      %s34 = scalar_select %p31, %s32, %s33
      %p37 = pneg %p31
      %p38 = scmp.eq.s32.totalorder %s22, 1
      %p39 = por %p37, %p38
      %p40 = scmp.ne.s32.totalorder %s32, %s35
      %p41 = scmp.eq.s32.totalorder %s22, 0
      %p42 = por %p40, %p41
      %p43 = scmp.ne.s32.totalorder %s32, %s35
      %p44 = scmp.eq.s32.totalorder %s27, 1
      %p45 = por %p43, %p44
      %p46 = scmp.ne.s32.totalorder %s35, %s36
      %p47 = scmp.eq.s32.totalorder %s27, 0
      %p48 = por %p46, %p47
      %p49 = scmp.ne.s32.totalorder %s35, %s36
      %p50 = scmp.eq.s32.totalorder %s28, 1
      %p51 = por %p49, %p50
      %p53 = scmp.ne.s32.totalorder %s36, %s52
      %p54 = scmp.eq.s32.totalorder %s28, 0
      %p55 = por %p53, %p54
      %s57 = sadd.s32 %s56, 1
      %p60 = scmp.eq.s32.totalorder %s22, 1
      %p61 = scmp.ne.s32.totalorder %s56, %s58
      %p62 = scmp.eq.s32.totalorder %s22, 0
      %p63 = por %p61, %p62
      %p64 = scmp.ne.s32.totalorder %s56, %s58
      %p65 = scmp.eq.s32.totalorder %s27, 1
      %p66 = por %p64, %p65
      %p67 = scmp.ne.s32.totalorder %s58, %s59
      %p68 = scmp.eq.s32.totalorder %s27, 0
      %p69 = por %p67, %p68
      %p70 = scmp.ne.s32.totalorder %s58, %s59
      %p71 = scmp.eq.s32.totalorder %s28, 1
      %p72 = por %p70, %p71
      %p74 = scmp.ne.s32.totalorder %s59, %s73
      %p75 = scmp.eq.s32.totalorder %s28, 0
      %p76 = por %p74, %p75
      %s78 = sadd.s32 %s77, 1
      %p81 = scmp.eq.s32.totalorder %s22, 1
      %p82 = scmp.ne.s32.totalorder %s77, %s79
      %p83 = scmp.eq.s32.totalorder %s22, 0
      %p84 = por %p82, %p83
      %p85 = scmp.ne.s32.totalorder %s77, %s79
      %p86 = scmp.eq.s32.totalorder %s27, 1
      %p87 = por %p85, %p86
      %p88 = scmp.ne.s32.totalorder %s79, %s80
      %p89 = scmp.eq.s32.totalorder %s27, 0
      %p90 = por %p88, %p89
      %p91 = scmp.ne.s32.totalorder %s79, %s80
      %p92 = scmp.eq.s32.totalorder %s28, 1
      %p93 = por %p91, %p92
      %p95 = scmp.ne.s32.totalorder %s80, %s94
      %p96 = scmp.eq.s32.totalorder %s28, 0
      %p97 = por %p95, %p96
      %s99 = sadd.s32 %s98, 1
      %p102 = scmp.eq.s32.totalorder %s22, 1
      %p103 = scmp.ne.s32.totalorder %s98, %s100
      %p104 = scmp.eq.s32.totalorder %s22, 0
      %p105 = por %p103, %p104
      %p106 = scmp.ne.s32.totalorder %s98, %s100
      %p107 = scmp.eq.s32.totalorder %s27, 1
      %p108 = por %p106, %p107
      %p109 = scmp.ne.s32.totalorder %s100, %s101
      %p110 = scmp.eq.s32.totalorder %s27, 0
      %p111 = por %p109, %p110
      %p112 = scmp.ne.s32.totalorder %s100, %s101
      %p113 = scmp.eq.s32.totalorder %s28, 1
      %p114 = por %p112, %p113
      %p116 = scmp.ne.s32.totalorder %s101, %s115
      %p117 = scmp.eq.s32.totalorder %s28, 0
      %p118 = por %p116, %p117
      %s120 = sadd.s32 %s119, 1
      %p123 = scmp.eq.s32.totalorder %s22, 1
      %p124 = scmp.ne.s32.totalorder %s119, %s121
      %p125 = scmp.eq.s32.totalorder %s22, 0
      %p126 = por %p124, %p125
      %p127 = scmp.ne.s32.totalorder %s119, %s121
      %p128 = scmp.eq.s32.totalorder %s27, 1
      %p129 = por %p127, %p128
      %p130 = scmp.ne.s32.totalorder %s121, %s122
      %p131 = scmp.eq.s32.totalorder %s27, 0
      %p132 = por %p130, %p131
      %p133 = scmp.ne.s32.totalorder %s121, %s122
      %p134 = scmp.eq.s32.totalorder %s28, 1
      %p135 = por %p133, %p134
      %p137 = scmp.ne.s32.totalorder %s122, %s136
      %p138 = scmp.eq.s32.totalorder %s28, 0
      %p139 = por %p137, %p138
      %s141 = sadd.s32 %s140, 1
      %p144 = scmp.eq.s32.totalorder %s22, 1
      %p145 = scmp.ne.s32.totalorder %s140, %s142
      %p146 = scmp.eq.s32.totalorder %s22, 0
      %p147 = por %p145, %p146
      %p148 = scmp.ne.s32.totalorder %s140, %s142
      %p149 = scmp.eq.s32.totalorder %s27, 1
      %p150 = por %p148, %p149
      %p151 = scmp.ne.s32.totalorder %s142, %s143
      %p152 = scmp.eq.s32.totalorder %s27, 0
      %p153 = por %p151, %p152
      %p154 = scmp.ne.s32.totalorder %s142, %s143
      %p155 = scmp.eq.s32.totalorder %s28, 1
      %p156 = por %p154, %p155
      %p158 = scmp.ne.s32.totalorder %s143, %s157
      %p159 = scmp.eq.s32.totalorder %s28, 0
      %p160 = por %p158, %p159
      %s162 = sadd.s32 %s161, 1
      %p165 = scmp.eq.s32.totalorder %s22, 1
      %p166 = scmp.ne.s32.totalorder %s161, %s163
      %p167 = scmp.eq.s32.totalorder %s22, 0
      %p168 = por %p166, %p167
      %p169 = scmp.ne.s32.totalorder %s161, %s163
      %p170 = scmp.eq.s32.totalorder %s27, 1
      %p171 = por %p169, %p170
      %p172 = scmp.ne.s32.totalorder %s163, %s164
      %p173 = scmp.eq.s32.totalorder %s27, 0
      %p174 = por %p172, %p173
      %p175 = scmp.ne.s32.totalorder %s163, %s164
      %p176 = scmp.eq.s32.totalorder %s28, 1
      %p177 = por %p175, %p176
      %p179 = scmp.ne.s32.totalorder %s164, %s178
      %p180 = scmp.eq.s32.totalorder %s28, 0
      %p181 = por %p179, %p180
      %s183 = sadd.s32 %s182, 1
      %p186 = scmp.eq.s32.totalorder %s22, 1
      %p187 = scmp.ne.s32.totalorder %s182, %s184
      %p188 = scmp.eq.s32.totalorder %s22, 0
      %p189 = por %p187, %p188
      %p190 = scmp.ne.s32.totalorder %s182, %s184
      %p191 = scmp.eq.s32.totalorder %s27, 1
      %p192 = por %p190, %p191
      %p193 = scmp.ne.s32.totalorder %s184, %s185
      %p194 = scmp.eq.s32.totalorder %s27, 0
      %p195 = por %p193, %p194
      %p196 = scmp.ne.s32.totalorder %s184, %s185
      %p197 = scmp.eq.s32.totalorder %s28, 1
      %p198 = por %p196, %p197
      %p200 = scmp.ne.s32.totalorder %s185, %s199
      %p201 = scmp.eq.s32.totalorder %s28, 0
      %p202 = por %p200, %p201
      %s204 = sadd.s32 %s203, 1
      %p207 = scmp.eq.s32.totalorder %s22, 1
      %p208 = scmp.ne.s32.totalorder %s203, %s205
      %p209 = scmp.eq.s32.totalorder %s22, 0
      %p210 = por %p208, %p209
      %p211 = scmp.ne.s32.totalorder %s203, %s205
      %p212 = scmp.eq.s32.totalorder %s27, 1
      %p213 = por %p211, %p212
      %p214 = scmp.ne.s32.totalorder %s205, %s206
      %p215 = scmp.eq.s32.totalorder %s27, 0
      %p216 = por %p214, %p215
      %p217 = scmp.ne.s32.totalorder %s205, %s206
      %p218 = scmp.eq.s32.totalorder %s28, 1
      %p219 = por %p217, %p218
      %p221 = scmp.ne.s32.totalorder %s206, %s220
      %p222 = scmp.eq.s32.totalorder %s28, 0
      %p223 = por %p221, %p222
      %s225 = sadd.s32 %s224, 1
      %p228 = scmp.eq.s32.totalorder %s22, 1
      %p229 = scmp.ne.s32.totalorder %s224, %s226
      %p230 = scmp.eq.s32.totalorder %s22, 0
      %p231 = por %p229, %p230
      %p232 = scmp.ne.s32.totalorder %s224, %s226
      %p233 = scmp.eq.s32.totalorder %s27, 1
      %p234 = por %p232, %p233
      %p235 = scmp.ne.s32.totalorder %s226, %s227
      %p236 = scmp.eq.s32.totalorder %s27, 0
      %p237 = por %p235, %p236
      %p238 = scmp.ne.s32.totalorder %s226, %s227
      %p239 = scmp.eq.s32.totalorder %s28, 1
      %p240 = por %p238, %p239
      %p242 = scmp.ne.s32.totalorder %s227, %s241
      %p243 = scmp.eq.s32.totalorder %s28, 0
      %p244 = por %p242, %p243
      %s246 = sadd.s32 %s245, 1
      %p249 = scmp.eq.s32.totalorder %s22, 1
      %p250 = scmp.ne.s32.totalorder %s245, %s247
      %p251 = scmp.eq.s32.totalorder %s22, 0
      %p252 = por %p250, %p251
      %p253 = scmp.ne.s32.totalorder %s245, %s247
      %p254 = scmp.eq.s32.totalorder %s27, 1
      %p255 = por %p253, %p254
      %p256 = scmp.ne.s32.totalorder %s247, %s248
      %p257 = scmp.eq.s32.totalorder %s27, 0
      %p258 = por %p256, %p257
      %p259 = scmp.ne.s32.totalorder %s247, %s248
      %p260 = scmp.eq.s32.totalorder %s28, 1
      %p261 = por %p259, %p260
      %p263 = scmp.ne.s32.totalorder %s248, %s262
      %p264 = scmp.eq.s32.totalorder %s28, 0
      %p265 = por %p263, %p264
      %s267 = sadd.s32 %s266, 1
      %p270 = scmp.eq.s32.totalorder %s22, 1
      %p271 = scmp.ne.s32.totalorder %s266, %s268
      %p272 = scmp.eq.s32.totalorder %s22, 0
      %p273 = por %p271, %p272
      %p274 = scmp.ne.s32.totalorder %s266, %s268
      %p275 = scmp.eq.s32.totalorder %s27, 1
      %p276 = por %p274, %p275
      %p277 = scmp.ne.s32.totalorder %s268, %s269
      %p278 = scmp.eq.s32.totalorder %s27, 0
      %p279 = por %p277, %p278
      %p280 = scmp.ne.s32.totalorder %s268, %s269
      %p281 = scmp.eq.s32.totalorder %s28, 1
      %p282 = por %p280, %p281
      %p284 = scmp.ne.s32.totalorder %s269, %s283
      %p285 = scmp.eq.s32.totalorder %s28, 0
      %p286 = por %p284, %p285
      %s288 = sadd.s32 %s287, 1
      %p291 = scmp.eq.s32.totalorder %s22, 1
      %p292 = scmp.ne.s32.totalorder %s287, %s289
      %p293 = scmp.eq.s32.totalorder %s22, 0
      %p294 = por %p292, %p293
      %p295 = scmp.ne.s32.totalorder %s287, %s289
      %p296 = scmp.eq.s32.totalorder %s27, 1
      %p297 = por %p295, %p296
      %p298 = scmp.ne.s32.totalorder %s289, %s290
      %p299 = scmp.eq.s32.totalorder %s27, 0
      %p300 = por %p298, %p299
      %p301 = scmp.ne.s32.totalorder %s289, %s290
      %p302 = scmp.eq.s32.totalorder %s28, 1
      %p303 = por %p301, %p302
      %p305 = scmp.ne.s32.totalorder %s290, %s304
      %p306 = scmp.eq.s32.totalorder %s28, 0
      %p307 = por %p305, %p306
      %s308 = ssub.s32 %s22, %s29
      %p309 = scmp.eq.s32.totalorder %s308, 0
      %s311 = sadd.s32 %s310, 1
      %s312 = scalar_select %p309, %s310, %s311
      %p315 = pneg %p309
      %p316 = scmp.eq.s32.totalorder %s22, 1
      %p317 = por %p315, %p316
      %p318 = scmp.ne.s32.totalorder %s310, %s313
      %p319 = scmp.eq.s32.totalorder %s22, 0
      %p320 = por %p318, %p319
      %p321 = scmp.ne.s32.totalorder %s310, %s313
      %p322 = scmp.eq.s32.totalorder %s27, 1
      %p323 = por %p321, %p322
      %p324 = scmp.ne.s32.totalorder %s313, %s314
      %p325 = scmp.eq.s32.totalorder %s27, 0
      %p326 = por %p324, %p325
      %p327 = scmp.ne.s32.totalorder %s313, %s314
      %p328 = scmp.eq.s32.totalorder %s28, 1
      %p329 = por %p327, %p328
      %p331 = scmp.ne.s32.totalorder %s314, %s330
      %p332 = scmp.eq.s32.totalorder %s28, 0
      %p333 = por %p331, %p332
      %p334 = scmp.le.s32.totalorder 1, %s22
      %p335 = scmp.lt.s32.totalorder %s22, 3
      %p336 = pnand %p334, %p335
      %p337 = pneg %p336
      // Predicated region
      $region9: #{tpu_custom_call.1} parent=5 // pred_check
        _
      $region10: #{tpu_custom_call.1} parent=5 // pred_check_branch
        %339 = sbr.rel (%p336) target = $region12
      $region11: #{tpu_custom_call.1} parent=5 // pred_region
        %s340 = ssub.s32 %s22, 1
        // Predicated region
        $region13: #{tpu_custom_call.1} parent=11 // pred_check
          %p341 = pneg %p69
        $region14: #{tpu_custom_call.1} parent=11 // pred_check_branch
          %343 = sbr.rel (%p341) target = $region16
        $region15: #{tpu_custom_call.1} parent=11 // pred_region
          _
        $region16: #{tpu_custom_call.1} parent=11 // pred_fallthru
          _
        // Predicated region
        $region17: #{tpu_custom_call.1} parent=11 // pred_check
          %p344 = pneg %p90
        $region18: #{tpu_custom_call.1} parent=11 // pred_check_branch
          %346 = sbr.rel (%p344) target = $region20
        $region19: #{tpu_custom_call.1} parent=11 // pred_region
          _
        $region20: #{tpu_custom_call.1} parent=11 // pred_fallthru
          _
        // Predicated region
        $region21: #{tpu_custom_call.1} parent=11 // pred_check
          %p347 = pneg %p111
        $region22: #{tpu_custom_call.1} parent=11 // pred_check_branch
          %349 = sbr.rel (%p347) target = $region24
        $region23: #{tpu_custom_call.1} parent=11 // pred_region
          _
        $region24: #{tpu_custom_call.1} parent=11 // pred_fallthru
          _
        // Predicated region
        $region25: #{tpu_custom_call.1} parent=11 // pred_check
          %p350 = pneg %p132
        $region26: #{tpu_custom_call.1} parent=11 // pred_check_branch
          %352 = sbr.rel (%p350) target = $region28
        $region27: #{tpu_custom_call.1} parent=11 // pred_region
          _
        $region28: #{tpu_custom_call.1} parent=11 // pred_fallthru
          _
        // Predicated region
        $region29: #{tpu_custom_call.1} parent=11 // pred_check
          %p353 = pneg %p153
        $region30: #{tpu_custom_call.1} parent=11 // pred_check_branch
          %355 = sbr.rel (%p353) target = $region32
        $region31: #{tpu_custom_call.1} parent=11 // pred_region
          _
        $region32: #{tpu_custom_call.1} parent=11 // pred_fallthru
          _
        // Predicated region
        $region33: #{tpu_custom_call.1} parent=11 // pred_check
          %p356 = pneg %p174
        $region34: #{tpu_custom_call.1} parent=11 // pred_check_branch
          %358 = sbr.rel (%p356) target = $region36
        $region35: #{tpu_custom_call.1} parent=11 // pred_region
          _
        $region36: #{tpu_custom_call.1} parent=11 // pred_fallthru
          _
        // Predicated region
        $region37: #{tpu_custom_call.1} parent=11 // pred_check
          %p359 = pneg %p195
        $region38: #{tpu_custom_call.1} parent=11 // pred_check_branch
          %361 = sbr.rel (%p359) target = $region40
        $region39: #{tpu_custom_call.1} parent=11 // pred_region
          _
        $region40: #{tpu_custom_call.1} parent=11 // pred_fallthru
          _
        // Predicated region
        $region41: #{tpu_custom_call.1} parent=11 // pred_check
          %p362 = pneg %p216
        $region42: #{tpu_custom_call.1} parent=11 // pred_check_branch
          %364 = sbr.rel (%p362) target = $region44
        $region43: #{tpu_custom_call.1} parent=11 // pred_region
          _
        $region44: #{tpu_custom_call.1} parent=11 // pred_fallthru
          _
        // Predicated region
        $region45: #{tpu_custom_call.1} parent=11 // pred_check
          %p365 = pneg %p237
        $region46: #{tpu_custom_call.1} parent=11 // pred_check_branch
          %367 = sbr.rel (%p365) target = $region48
        $region47: #{tpu_custom_call.1} parent=11 // pred_region
          _
        $region48: #{tpu_custom_call.1} parent=11 // pred_fallthru
          _
        // Predicated region
        $region49: #{tpu_custom_call.1} parent=11 // pred_check
          %p368 = pneg %p258
        $region50: #{tpu_custom_call.1} parent=11 // pred_check_branch
          %370 = sbr.rel (%p368) target = $region52
        $region51: #{tpu_custom_call.1} parent=11 // pred_region
          _
        $region52: #{tpu_custom_call.1} parent=11 // pred_fallthru
          _
        // Predicated region
        $region53: #{tpu_custom_call.1} parent=11 // pred_check
          %p371 = pneg %p279
        $region54: #{tpu_custom_call.1} parent=11 // pred_check_branch
          %373 = sbr.rel (%p371) target = $region56
        $region55: #{tpu_custom_call.1} parent=11 // pred_region
          _
        $region56: #{tpu_custom_call.1} parent=11 // pred_fallthru
          _
        // Predicated region
        $region57: #{tpu_custom_call.1} parent=11 // pred_check
          %p374 = pneg %p300
        $region58: #{tpu_custom_call.1} parent=11 // pred_check_branch
          %376 = sbr.rel (%p374) target = $region60
        $region59: #{tpu_custom_call.1} parent=11 // pred_region
          _
        $region60: #{tpu_custom_call.1} parent=11 // pred_fallthru
          _
      $region12: #{tpu_custom_call.1} parent=5 // pred_fallthru
        _
      %p377 = scmp.lt.s32.totalorder %s22, 2
      // Predicated region
      $region61: #{tpu_custom_call.1} parent=5 // pred_check
        %p378 = pneg %p377
      $region62: #{tpu_custom_call.1} parent=5 // pred_check_branch
        %380 = sbr.rel (%p378) target = $region64
      $region63: #{tpu_custom_call.1} parent=5 // pred_region
        // Predicated region
        $region65: #{tpu_custom_call.1} parent=63 // pred_check
          %p381 = pneg %p42
        $region66: #{tpu_custom_call.1} parent=63 // pred_check_branch
          %383 = sbr.rel (%p381) target = $region68
        $region67: #{tpu_custom_call.1} parent=63 // pred_region
          %p384 = scmp.lt.s32.totalorder %s22, 1
          %s385 = scalar_select %p384, %s22, 1
          %s386 = smul.addr %s385, 8
          %s387 = scalar_lea.vmem %s0, %s386
        $region68: #{tpu_custom_call.1} parent=63 // pred_fallthru
          _
      $region64: #{tpu_custom_call.1} parent=5 // pred_fallthru
        _
      %p388 = scmp.le.s32.totalorder 1, %s22
      %p389 = scmp.lt.s32.totalorder %s22, 3
      %p390 = pnand %p388, %p389
      %p391 = pneg %p390
      // Predicated region
      $region69: #{tpu_custom_call.1} parent=5 // pred_check
        _
      $region70: #{tpu_custom_call.1} parent=5 // pred_check_branch
        %393 = sbr.rel (%p390) target = $region72
      $region71: #{tpu_custom_call.1} parent=5 // pred_region
        %s394 = ssub.s32 %s22, 1
        %p395 = scmp.lt.s32.totalorder %s27, 1
        %s396 = scalar_select %p395, %s27, 1
        %s397 = smul.addr %s396, 8
        %s398 = scalar_lea.vmem %s0, %s397
        %p399 = pneg %p48
        %p400 = pneg %p45
        %p401 = pneg %p69
        %p402 = pneg %p66
        %p403 = pneg %p90
        %p404 = pneg %p87
        %p405 = pneg %p111
        %p406 = pneg %p108
        %p407 = pneg %p132
        %p408 = pneg %p129
        %p409 = pneg %p153
        %p410 = pneg %p150
        %p411 = pneg %p174
        %p412 = pneg %p171
        %p413 = pneg %p195
        %p414 = pneg %p192
        %p415 = pneg %p216
        %p416 = pneg %p213
        %p417 = pneg %p237
        %p418 = pneg %p234
        %p419 = pneg %p258
        %p420 = pneg %p255
        %p421 = pneg %p279
        %p422 = pneg %p276
        %p423 = pneg %p300
        %p424 = pneg %p297
        %p425 = pneg %p326
        %p426 = pneg %p323
        %s427 = sand.u32 %s313, 1
        %s428 = scalar_lea.sflag [#allocation4], %s427
        %s429 = sand.u32 %s313, 1
        %s430 = smul.addr %s429, 8
        %s431 = scalar_lea.vmem [#allocation3], %s430
        %p432 = scmp.lt.s32.totalorder %s27, 1
        %s433 = scalar_select %p432, %s27, 1
        %s434 = smul.addr %s433, 8
        %s435 = scalar_lea.vmem %s0, %s434
        %v437 = vld [vmem:[%s435] sm:$0xff]
        %vm438 = vcmask 261120
        %v439 = vsel %vm438, %v437, 0.0
        %440 = vadd.xlane.f32.xlu0 %v439
        %v441 = vpop.xlane.xlu0 %440
        %v442 = vrcp.pop 32.0
        %v443 = vmul.f32 %v441, %v442
        %v444 = vsub.f32 %v437, %v443
        %v445 = vmul.f32 %v444, %v444
        %v446 = vsel %vm438, %v445, 0.0
        %447 = vadd.xlane.f32.xlu0 %v446
        %v448 = vpop.xlane.xlu0 %447
        %v449 = vmul.f32 %v448, %v442
        %v450 = vadd.f32 %v449, 1e-05
        %v451 = vrsqrt.pop %v450
        %v452 = vmul.f32 %v444, %v451
        %v453 = vld [vmem:[%s1] sm:$0x1]
        %v455 = vlaneseq
        %v456 = vshrl.u32 %v455, 7
        %v457 = vsub.s32 0, %v456
        %v458 = vrot.slane %v453, %v457
        %v460 = vmul.f32 %v452, %v458
        %v461 = vld [vmem:[%s2] sm:$0x1]
        %v463 = vlaneseq
        %v464 = vshrl.u32 %v463, 7
        %v465 = vsub.s32 0, %v464
        %v466 = vrot.slane %v461, %v465
        %v468 = vadd.f32 %v460, %v466
        %v469 = vpack.c.bf16 %v468, %v468
        %v470 = vld [vmem:[%s5] sm:$0xf]
        %v471 = vld [vmem:[%s5 + $0x4] sm:$0xf]
        %v472 = vld [vmem:[%s5 + $0x8] sm:$0xf]
        %v473 = vld [vmem:[%s5 + $0xc] sm:$0xf]
        %v474 = vld [vmem:[%s6] sm:$0x1]
        %v476 = vlaneseq
        %v477 = vshrl.u32 %v476, 7
        %v478 = vsub.s32 0, %v477
        %v479 = vrot.slane %v474, %v478
        %v485 = vunpack.c.l.b16 %v470
        %v486 = vunpack.c.l.b16 %v471
        %v487 = vunpack.c.l.b16 %v472
        %v488 = vunpack.c.l.b16 %v473
        %v489 = vpack.c.b16 %v486, %v485
        %v490 = vpack.c.b16 %v488, %v487
        %v494 = vsel %vm438, %v469, 0
        %496 = vmatprep.subr.bf16.mxu0 0
        %497 = vmatpush1.bf16.msra.mxu0 0
        %498 = vmatprep.subr.bf16.mxu0 0
        %499 = vmatpush1.bf16.msra.mxu0 0
        %500 = vmatprep.subr.bf16.mxu0 0
        %501 = vmatpush1.bf16.msra.mxu0 0
        %502 = vmatprep.subr.bf16.mxu0 0
        %503 = vmatpush1.bf16.msra.mxu0 0
        %504 = vmatprep.subr.bf16.mxu0 0
        %505 = vmatpush1.bf16.msra.mxu0 0
        %506 = vmatprep.subr.bf16.mxu0 0
        %507 = vmatpush1.bf16.msra.mxu0 0
        %508 = vmatprep.subr.bf16.mxu0 0
        %509 = vmatpush1.bf16.msra.mxu0 %v490
        %510 = vmatprep.subr.bf16.mxu0 0
        %511 = vmatpush1.bf16.msra.mxu0 %v489
        %512 = vmatprep.subr.bf16.mxu0 0
        %513 = vmatpush2.bf16.msra.mxu0 0
        %514 = vmatprep.subr.bf16.mxu0 0
        %515 = vmatpush2.bf16.msra.mxu0 0
        %516 = vmatprep.subr.bf16.mxu0 0
        %517 = vmatpush2.bf16.msra.mxu0 0
        %518 = vmatprep.subr.bf16.mxu0 0
        %519 = vmatpush2.bf16.msra.mxu0 0
        %520 = vmatprep.subr.bf16.mxu0 0
        %521 = vmatpush2.bf16.msra.mxu0 0
        %522 = vmatprep.subr.bf16.mxu0 0
        %523 = vmatpush2.bf16.msra.mxu0 0
        %524 = vmatprep.subr.bf16.mxu0 0
        %525 = vmatpush2.bf16.msra.mxu0 0
        %526 = vmatprep.subr.bf16.mxu0 0
        %527 = vmatpush2.bf16.msra.mxu0 0
        %528 = vmatprep.mubr.bf16.mxu0 0
        %529 = vmatmul.mubr.bf16.gmra.mxu0 %v494
        %v530 = vpop.f32.mrf.mxu0
        %v531 = vadd.f32 %v479, %v530
        %v532 = vpop.f32.mrf.mxu0
        %v533 = vpop.f32.mrf.mxu0
        %v534 = vpop.f32.mrf.mxu0
        %535 = vdwg.mxu0
        %v536 = vmul.f32 %v531, 0.35355338
        %v537 = vlaneseq
        %v538 = vshrl.u32 %v537, 7
        %v539 = vlaneseq
        %v540 = vand.u32 %v539, 127
        %vm541 = vcmp.gt.s32.totalorder %v540, %v538
        %v542 = vsel %vm541, -1e+30, 0.0
        %v543 = vpack.c.bf16 %v536, %v536
        %v544 = vpack.c.bf16 %v531, %v531
        %546 = vrot.lane.b32.xlu0 %v544, 96
        %v547 = vpop.permute.xlu0 %546
        %vm548 = vcmask 64512
        %v550 = vsel %vm548, %v543, 0
        %v553 = vsel %vm548, %v547, 0
        %555 = vmatprep.subr.bf16.mxu0 0
        %556 = vmatpush1.bf16.xpose.msra.mxu0 0
        %557 = vmatprep.subr.bf16.mxu0 0
        %558 = vmatpush1.bf16.xpose.msra.mxu0 0
        %559 = vmatprep.subr.bf16.mxu0 0
        %560 = vmatpush1.bf16.xpose.msra.mxu0 0
        %561 = vmatprep.subr.bf16.mxu0 0
        %562 = vmatpush1.bf16.xpose.msra.mxu0 0
        %563 = vmatprep.subr.bf16.mxu0 0
        %564 = vmatpush1.bf16.xpose.msra.mxu0 0
        %565 = vmatprep.subr.bf16.mxu0 0
        %566 = vmatpush1.bf16.xpose.msra.mxu0 0
        %567 = vmatprep.subr.bf16.mxu0 0
        %568 = vmatpush1.bf16.xpose.msra.mxu0 0
        %569 = vmatprep.subr.bf16.mxu0 0
        %570 = vmatpush1.bf16.xpose.msra.mxu0 %v553
        %571 = vmatprep.subr.bf16.mxu0 0
        %572 = vmatpush2.bf16.xpose.msra.mxu0 0
        %573 = vmatprep.subr.bf16.mxu0 0
        %574 = vmatpush2.bf16.xpose.msra.mxu0 0
        %575 = vmatprep.subr.bf16.mxu0 0
        %576 = vmatpush2.bf16.xpose.msra.mxu0 0
        %577 = vmatprep.subr.bf16.mxu0 0
        %578 = vmatpush2.bf16.xpose.msra.mxu0 0
        %579 = vmatprep.subr.bf16.mxu0 0
        %580 = vmatpush2.bf16.xpose.msra.mxu0 0
        %581 = vmatprep.subr.bf16.mxu0 0
        %582 = vmatpush2.bf16.xpose.msra.mxu0 0
        %583 = vmatprep.subr.bf16.mxu0 0
        %584 = vmatpush2.bf16.xpose.msra.mxu0 0
        %585 = vmatprep.subr.bf16.mxu0 0
        %586 = vmatpush2.bf16.xpose.msra.mxu0 0
        %587 = vmatprep.mubr.bf16.mxu0 0
        %588 = vmatmul.mubr.bf16.gmra.mxu0 %v550
        %v589 = vpop.f32.mrf.mxu0
        %v590 = vadd.f32 %v542, %v589
        %v591 = vpop.f32.mrf.mxu0
        %v592 = vpop.f32.mrf.mxu0
        %v593 = vpop.f32.mrf.mxu0
        %594 = vdwg.mxu0
        %v595 = vsel %vm548, %v590, -inf
        %596 = vmax.xlane.f32.xlu0 %v595
        %v597 = vpop.xlane.xlu0 %596
        %v598 = vsub.f32 %v590, %v597
        %v599 = vmul.f32 %v598, 1.442695
        %v600 = vpow.pop %v599
        %v601 = vsel %vm548, %v600, 0.0
        %602 = vadd.xlane.f32.xlu0 %v601
        %v603 = vpop.xlane.xlu0 %602
        %v604 = vrcp.pop %v603
        %v605 = vmul.f32 %v600, %v604
        %v606 = vpack.c.bf16 %v605, %v605
        %607 = vrot.lane.b32.xlu0 %v544, 64
        %v608 = vpop.permute.xlu0 %607
        %v610 = vsel %vm548, %v606, 0
        %vm612 = vcmask 1043456
        %v614 = vsel %vm612, %v608, 0
        %616 = vmatprep.subr.bf16.mxu0 0
        %617 = vmatpush1.bf16.msra.mxu0 0
        %618 = vmatprep.subr.bf16.mxu0 0
        %619 = vmatpush1.bf16.msra.mxu0 0
        %620 = vmatprep.subr.bf16.mxu0 0
        %621 = vmatpush1.bf16.msra.mxu0 0
        %622 = vmatprep.subr.bf16.mxu0 0
        %623 = vmatpush1.bf16.msra.mxu0 0
        %624 = vmatprep.subr.bf16.mxu0 0
        %625 = vmatpush1.bf16.msra.mxu0 0
        %626 = vmatprep.subr.bf16.mxu0 0
        %627 = vmatpush1.bf16.msra.mxu0 0
        %628 = vmatprep.subr.bf16.mxu0 0
        %629 = vmatpush1.bf16.msra.mxu0 0
        %630 = vmatprep.subr.bf16.mxu0 0
        %631 = vmatpush1.bf16.msra.mxu0 %v614
        %632 = vmatprep.subr.bf16.mxu0 0
        %633 = vmatpush2.bf16.msra.mxu0 0
        %634 = vmatprep.subr.bf16.mxu0 0
        %635 = vmatpush2.bf16.msra.mxu0 0
        %636 = vmatprep.subr.bf16.mxu0 0
        %637 = vmatpush2.bf16.msra.mxu0 0
        %638 = vmatprep.subr.bf16.mxu0 0
        %639 = vmatpush2.bf16.msra.mxu0 0
        %640 = vmatprep.subr.bf16.mxu0 0
        %641 = vmatpush2.bf16.msra.mxu0 0
        %642 = vmatprep.subr.bf16.mxu0 0
        %643 = vmatpush2.bf16.msra.mxu0 0
        %644 = vmatprep.subr.bf16.mxu0 0
        %645 = vmatpush2.bf16.msra.mxu0 0
        %646 = vmatprep.subr.bf16.mxu0 0
        %647 = vmatpush2.bf16.msra.mxu0 0
        %648 = vmatprep.mubr.bf16.mxu0 0
        %649 = vmatmul.mubr.bf16.gmra.mxu0 %v610
        %v650 = vpop.f32.mrf.mxu0
        %v651 = vadd.f32 0.0, %v650
        %v652 = vpop.f32.mrf.mxu0
        %v653 = vpop.f32.mrf.mxu0
        %v654 = vpop.f32.mrf.mxu0
        %655 = vdwg.mxu0
        %v656 = vpack.c.bf16 %v651, %v651
        %v657 = vld [vmem:[%s7] sm:$0xf]
        %659 = vrot.lane.b32.xlu0 %v543, 120
        %v660 = vpop.permute.xlu0 %659
        %661 = vrot.lane.b32.xlu0 %v544, 88
        %v662 = vpop.permute.xlu0 %661
        %v664 = vsel %vm548, %v660, 0
        %v667 = vsel %vm548, %v662, 0
        %669 = vmatprep.subr.bf16.mxu0 0
        %670 = vmatpush1.bf16.xpose.msra.mxu0 0
        %671 = vmatprep.subr.bf16.mxu0 0
        %672 = vmatpush1.bf16.xpose.msra.mxu0 0
        %673 = vmatprep.subr.bf16.mxu0 0
        %674 = vmatpush1.bf16.xpose.msra.mxu0 0
        %675 = vmatprep.subr.bf16.mxu0 0
        %676 = vmatpush1.bf16.xpose.msra.mxu0 0
        %677 = vmatprep.subr.bf16.mxu0 0
        %678 = vmatpush1.bf16.xpose.msra.mxu0 0
        %679 = vmatprep.subr.bf16.mxu0 0
        %680 = vmatpush1.bf16.xpose.msra.mxu0 0
        %681 = vmatprep.subr.bf16.mxu0 0
        %682 = vmatpush1.bf16.xpose.msra.mxu0 0
        %683 = vmatprep.subr.bf16.mxu0 0
        %684 = vmatpush1.bf16.xpose.msra.mxu0 %v667
        %685 = vmatprep.subr.bf16.mxu0 0
        %686 = vmatpush2.bf16.xpose.msra.mxu0 0
        %687 = vmatprep.subr.bf16.mxu0 0
        %688 = vmatpush2.bf16.xpose.msra.mxu0 0
        %689 = vmatprep.subr.bf16.mxu0 0
        %690 = vmatpush2.bf16.xpose.msra.mxu0 0
        %691 = vmatprep.subr.bf16.mxu0 0
        %692 = vmatpush2.bf16.xpose.msra.mxu0 0
        %693 = vmatprep.subr.bf16.mxu0 0
        %694 = vmatpush2.bf16.xpose.msra.mxu0 0
        %695 = vmatprep.subr.bf16.mxu0 0
        %696 = vmatpush2.bf16.xpose.msra.mxu0 0
        %697 = vmatprep.subr.bf16.mxu0 0
        %698 = vmatpush2.bf16.xpose.msra.mxu0 0
        %699 = vmatprep.subr.bf16.mxu0 0
        %700 = vmatpush2.bf16.xpose.msra.mxu0 0
        %701 = vmatprep.mubr.bf16.mxu0 0
        %702 = vmatmul.mubr.bf16.gmra.mxu0 %v664
        %v703 = vpop.f32.mrf.mxu0
        %v704 = vadd.f32 %v542, %v703
        %v705 = vpop.f32.mrf.mxu0
        %v706 = vpop.f32.mrf.mxu0
        %v707 = vpop.f32.mrf.mxu0
        %708 = vdwg.mxu0
        %v709 = vsel %vm548, %v704, -inf
        %710 = vmax.xlane.f32.xlu0 %v709
        %v711 = vpop.xlane.xlu0 %710
        %v712 = vsub.f32 %v704, %v711
        %v713 = vmul.f32 %v712, 1.442695
        %v714 = vpow.pop %v713
        %v715 = vsel %vm548, %v714, 0.0
        %716 = vadd.xlane.f32.xlu0 %v715
        %v717 = vpop.xlane.xlu0 %716
        %v718 = vrcp.pop %v717
        %v719 = vmul.f32 %v714, %v718
        %v720 = vpack.c.bf16 %v719, %v719
        %721 = vrot.lane.b32.xlu0 %v544, 56
        %v722 = vpop.permute.xlu0 %721
        %v724 = vsel %vm548, %v720, 0
        %v727 = vsel %vm612, %v722, 0
        %729 = vmatprep.subr.bf16.mxu0 0
        %730 = vmatpush1.bf16.msra.mxu0 0
        %731 = vmatprep.subr.bf16.mxu0 0
        %732 = vmatpush1.bf16.msra.mxu0 0
        %733 = vmatprep.subr.bf16.mxu0 0
        %734 = vmatpush1.bf16.msra.mxu0 0
        %735 = vmatprep.subr.bf16.mxu0 0
        %736 = vmatpush1.bf16.msra.mxu0 0
        %737 = vmatprep.subr.bf16.mxu0 0
        %738 = vmatpush1.bf16.msra.mxu0 0
        %739 = vmatprep.subr.bf16.mxu0 0
        %740 = vmatpush1.bf16.msra.mxu0 0
        %741 = vmatprep.subr.bf16.mxu0 0
        %742 = vmatpush1.bf16.msra.mxu0 0
        %743 = vmatprep.subr.bf16.mxu0 0
        %744 = vmatpush1.bf16.msra.mxu0 %v727
        %745 = vmatprep.subr.bf16.mxu0 0
        %746 = vmatpush2.bf16.msra.mxu0 0
        %747 = vmatprep.subr.bf16.mxu0 0
        %748 = vmatpush2.bf16.msra.mxu0 0
        %749 = vmatprep.subr.bf16.mxu0 0
        %750 = vmatpush2.bf16.msra.mxu0 0
        %751 = vmatprep.subr.bf16.mxu0 0
        %752 = vmatpush2.bf16.msra.mxu0 0
        %753 = vmatprep.subr.bf16.mxu0 0
        %754 = vmatpush2.bf16.msra.mxu0 0
        %755 = vmatprep.subr.bf16.mxu0 0
        %756 = vmatpush2.bf16.msra.mxu0 0
        %757 = vmatprep.subr.bf16.mxu0 0
        %758 = vmatpush2.bf16.msra.mxu0 0
        %759 = vmatprep.subr.bf16.mxu0 0
        %760 = vmatpush2.bf16.msra.mxu0 0
        %761 = vmatprep.mubr.bf16.mxu0 0
        %762 = vmatmul.mubr.bf16.gmra.mxu0 %v724
        %v763 = vpop.f32.mrf.mxu0
        %v764 = vadd.f32 0.0, %v763
        %v765 = vpop.f32.mrf.mxu0
        %v766 = vpop.f32.mrf.mxu0
        %v767 = vpop.f32.mrf.mxu0
        %768 = vdwg.mxu0
        %v769 = vpack.c.bf16 %v764, %v764
        %v770 = vld [vmem:[%s7 + $0x4] sm:$0xf]
        %v772 = vsel %vm548, %v769, 0
        %v775 = vsel %vm612, %v770, 0
        %777 = vmatprep.subr.bf16.mxu0 0
        %778 = vmatpush1.bf16.msra.mxu0 0
        %779 = vmatprep.subr.bf16.mxu0 0
        %780 = vmatpush1.bf16.msra.mxu0 0
        %781 = vmatprep.subr.bf16.mxu0 0
        %782 = vmatpush1.bf16.msra.mxu0 0
        %783 = vmatprep.subr.bf16.mxu0 0
        %784 = vmatpush1.bf16.msra.mxu0 0
        %785 = vmatprep.subr.bf16.mxu0 0
        %786 = vmatpush1.bf16.msra.mxu0 0
        %787 = vmatprep.subr.bf16.mxu0 0
        %788 = vmatpush1.bf16.msra.mxu0 0
        %789 = vmatprep.subr.bf16.mxu0 0
        %790 = vmatpush1.bf16.msra.mxu0 0
        %791 = vmatprep.subr.bf16.mxu0 0
        %792 = vmatpush1.bf16.msra.mxu0 %v775
        %793 = vmatprep.subr.bf16.mxu0 0
        %794 = vmatpush2.bf16.msra.mxu0 0
        %795 = vmatprep.subr.bf16.mxu0 0
        %796 = vmatpush2.bf16.msra.mxu0 0
        %797 = vmatprep.subr.bf16.mxu0 0
        %798 = vmatpush2.bf16.msra.mxu0 0
        %799 = vmatprep.subr.bf16.mxu0 0
        %800 = vmatpush2.bf16.msra.mxu0 0
        %801 = vmatprep.subr.bf16.mxu0 0
        %802 = vmatpush2.bf16.msra.mxu0 0
        %803 = vmatprep.subr.bf16.mxu0 0
        %804 = vmatpush2.bf16.msra.mxu0 0
        %805 = vmatprep.subr.bf16.mxu0 0
        %806 = vmatpush2.bf16.msra.mxu0 0
        %807 = vmatprep.subr.bf16.mxu0 0
        %808 = vmatpush2.bf16.msra.mxu0 0
        %809 = vmatprep.mubr.bf16.mxu0 0
        %810 = vmatmul.mubr.bf16.gmra.mxu0 %v772
        %v811 = vpop.f32.mrf.mxu0
        %v812 = vadd.f32 0.0, %v811
        %v813 = vpop.f32.mrf.mxu0
        %v814 = vpop.f32.mrf.mxu0
        %v815 = vpop.f32.mrf.mxu0
        %816 = vdwg.mxu0
        %v818 = vsel %vm548, %v656, 0
        %v821 = vsel %vm612, %v657, 0
        %823 = vmatprep.subr.bf16.mxu0 0
        %824 = vmatpush1.bf16.msra.mxu0 0
        %825 = vmatprep.subr.bf16.mxu0 0
        %826 = vmatpush1.bf16.msra.mxu0 0
        %827 = vmatprep.subr.bf16.mxu0 0
        %828 = vmatpush1.bf16.msra.mxu0 0
        %829 = vmatprep.subr.bf16.mxu0 0
        %830 = vmatpush1.bf16.msra.mxu0 0
        %831 = vmatprep.subr.bf16.mxu0 0
        %832 = vmatpush1.bf16.msra.mxu0 0
        %833 = vmatprep.subr.bf16.mxu0 0
        %834 = vmatpush1.bf16.msra.mxu0 0
        %835 = vmatprep.subr.bf16.mxu0 0
        %836 = vmatpush1.bf16.msra.mxu0 0
        %837 = vmatprep.subr.bf16.mxu0 0
        %838 = vmatpush1.bf16.msra.mxu0 %v821
        %839 = vmatprep.subr.bf16.mxu0 0
        %840 = vmatpush2.bf16.msra.mxu0 0
        %841 = vmatprep.subr.bf16.mxu0 0
        %842 = vmatpush2.bf16.msra.mxu0 0
        %843 = vmatprep.subr.bf16.mxu0 0
        %844 = vmatpush2.bf16.msra.mxu0 0
        %845 = vmatprep.subr.bf16.mxu0 0
        %846 = vmatpush2.bf16.msra.mxu0 0
        %847 = vmatprep.subr.bf16.mxu0 0
        %848 = vmatpush2.bf16.msra.mxu0 0
        %849 = vmatprep.subr.bf16.mxu0 0
        %850 = vmatpush2.bf16.msra.mxu0 0
        %851 = vmatprep.subr.bf16.mxu0 0
        %852 = vmatpush2.bf16.msra.mxu0 0
        %853 = vmatprep.subr.bf16.mxu0 0
        %854 = vmatpush2.bf16.msra.mxu0 0
        %855 = vmatprep.mubr.bf16.mxu0 0
        %856 = vmatmul.mubr.bf16.gmra.mxu0 %v818
        %v857 = vpop.f32.mrf.mxu0
        %v858 = vadd.f32 %v812, %v857
        %v859 = vpop.f32.mrf.mxu0
        %v860 = vpop.f32.mrf.mxu0
        %v861 = vpop.f32.mrf.mxu0
        %862 = vdwg.mxu0
        %863 = vrot.lane.b32.xlu0 %v543, 112
        %v864 = vpop.permute.xlu0 %863
        %865 = vrot.lane.b32.xlu0 %v544, 80
        %v866 = vpop.permute.xlu0 %865
        %v868 = vsel %vm548, %v864, 0
        %v871 = vsel %vm548, %v866, 0
        %873 = vmatprep.subr.bf16.mxu0 0
        %874 = vmatpush1.bf16.xpose.msra.mxu0 0
        %875 = vmatprep.subr.bf16.mxu0 0
        %876 = vmatpush1.bf16.xpose.msra.mxu0 0
        %877 = vmatprep.subr.bf16.mxu0 0
        %878 = vmatpush1.bf16.xpose.msra.mxu0 0
        %879 = vmatprep.subr.bf16.mxu0 0
        %880 = vmatpush1.bf16.xpose.msra.mxu0 0
        %881 = vmatprep.subr.bf16.mxu0 0
        %882 = vmatpush1.bf16.xpose.msra.mxu0 0
        %883 = vmatprep.subr.bf16.mxu0 0
        %884 = vmatpush1.bf16.xpose.msra.mxu0 0
        %885 = vmatprep.subr.bf16.mxu0 0
        %886 = vmatpush1.bf16.xpose.msra.mxu0 0
        %887 = vmatprep.subr.bf16.mxu0 0
        %888 = vmatpush1.bf16.xpose.msra.mxu0 %v871
        %889 = vmatprep.subr.bf16.mxu0 0
        %890 = vmatpush2.bf16.xpose.msra.mxu0 0
        %891 = vmatprep.subr.bf16.mxu0 0
        %892 = vmatpush2.bf16.xpose.msra.mxu0 0
        %893 = vmatprep.subr.bf16.mxu0 0
        %894 = vmatpush2.bf16.xpose.msra.mxu0 0
        %895 = vmatprep.subr.bf16.mxu0 0
        %896 = vmatpush2.bf16.xpose.msra.mxu0 0
        %897 = vmatprep.subr.bf16.mxu0 0
        %898 = vmatpush2.bf16.xpose.msra.mxu0 0
        %899 = vmatprep.subr.bf16.mxu0 0
        %900 = vmatpush2.bf16.xpose.msra.mxu0 0
        %901 = vmatprep.subr.bf16.mxu0 0
        %902 = vmatpush2.bf16.xpose.msra.mxu0 0
        %903 = vmatprep.subr.bf16.mxu0 0
        %904 = vmatpush2.bf16.xpose.msra.mxu0 0
        %905 = vmatprep.mubr.bf16.mxu0 0
        %906 = vmatmul.mubr.bf16.gmra.mxu0 %v868
        %v907 = vpop.f32.mrf.mxu0
        %v908 = vadd.f32 %v542, %v907
        %v909 = vpop.f32.mrf.mxu0
        %v910 = vpop.f32.mrf.mxu0
        %v911 = vpop.f32.mrf.mxu0
        %912 = vdwg.mxu0
        %v913 = vsel %vm548, %v908, -inf
        %914 = vmax.xlane.f32.xlu0 %v913
        %v915 = vpop.xlane.xlu0 %914
        %v916 = vsub.f32 %v908, %v915
        %v917 = vmul.f32 %v916, 1.442695
        %v918 = vpow.pop %v917
        %v919 = vsel %vm548, %v918, 0.0
        %920 = vadd.xlane.f32.xlu0 %v919
        %v921 = vpop.xlane.xlu0 %920
        %v922 = vrcp.pop %v921
        %v923 = vmul.f32 %v918, %v922
        %v924 = vpack.c.bf16 %v923, %v923
        %925 = vrot.lane.b32.xlu0 %v544, 48
        %v926 = vpop.permute.xlu0 %925
        %v928 = vsel %vm548, %v924, 0
        %v931 = vsel %vm612, %v926, 0
        %933 = vmatprep.subr.bf16.mxu0 0
        %934 = vmatpush1.bf16.msra.mxu0 0
        %935 = vmatprep.subr.bf16.mxu0 0
        %936 = vmatpush1.bf16.msra.mxu0 0
        %937 = vmatprep.subr.bf16.mxu0 0
        %938 = vmatpush1.bf16.msra.mxu0 0
        %939 = vmatprep.subr.bf16.mxu0 0
        %940 = vmatpush1.bf16.msra.mxu0 0
        %941 = vmatprep.subr.bf16.mxu0 0
        %942 = vmatpush1.bf16.msra.mxu0 0
        %943 = vmatprep.subr.bf16.mxu0 0
        %944 = vmatpush1.bf16.msra.mxu0 0
        %945 = vmatprep.subr.bf16.mxu0 0
        %946 = vmatpush1.bf16.msra.mxu0 0
        %947 = vmatprep.subr.bf16.mxu0 0
        %948 = vmatpush1.bf16.msra.mxu0 %v931
        %949 = vmatprep.subr.bf16.mxu0 0
        %950 = vmatpush2.bf16.msra.mxu0 0
        %951 = vmatprep.subr.bf16.mxu0 0
        %952 = vmatpush2.bf16.msra.mxu0 0
        %953 = vmatprep.subr.bf16.mxu0 0
        %954 = vmatpush2.bf16.msra.mxu0 0
        %955 = vmatprep.subr.bf16.mxu0 0
        %956 = vmatpush2.bf16.msra.mxu0 0
        %957 = vmatprep.subr.bf16.mxu0 0
        %958 = vmatpush2.bf16.msra.mxu0 0
        %959 = vmatprep.subr.bf16.mxu0 0
        %960 = vmatpush2.bf16.msra.mxu0 0
        %961 = vmatprep.subr.bf16.mxu0 0
        %962 = vmatpush2.bf16.msra.mxu0 0
        %963 = vmatprep.subr.bf16.mxu0 0
        %964 = vmatpush2.bf16.msra.mxu0 0
        %965 = vmatprep.mubr.bf16.mxu0 0
        %966 = vmatmul.mubr.bf16.gmra.mxu0 %v928
        %v967 = vpop.f32.mrf.mxu0
        %v968 = vadd.f32 0.0, %v967
        %v969 = vpop.f32.mrf.mxu0
        %v970 = vpop.f32.mrf.mxu0
        %v971 = vpop.f32.mrf.mxu0
        %972 = vdwg.mxu0
        %v973 = vpack.c.bf16 %v968, %v968
        %v974 = vld [vmem:[%s7 + $0x8] sm:$0xf]
        %v976 = vsel %vm548, %v973, 0
        %v979 = vsel %vm612, %v974, 0
        %981 = vmatprep.subr.bf16.mxu0 0
        %982 = vmatpush1.bf16.msra.mxu0 0
        %983 = vmatprep.subr.bf16.mxu0 0
        %984 = vmatpush1.bf16.msra.mxu0 0
        %985 = vmatprep.subr.bf16.mxu0 0
        %986 = vmatpush1.bf16.msra.mxu0 0
        %987 = vmatprep.subr.bf16.mxu0 0
        %988 = vmatpush1.bf16.msra.mxu0 0
        %989 = vmatprep.subr.bf16.mxu0 0
        %990 = vmatpush1.bf16.msra.mxu0 0
        %991 = vmatprep.subr.bf16.mxu0 0
        %992 = vmatpush1.bf16.msra.mxu0 0
        %993 = vmatprep.subr.bf16.mxu0 0
        %994 = vmatpush1.bf16.msra.mxu0 0
        %995 = vmatprep.subr.bf16.mxu0 0
        %996 = vmatpush1.bf16.msra.mxu0 %v979
        %997 = vmatprep.subr.bf16.mxu0 0
        %998 = vmatpush2.bf16.msra.mxu0 0
        %999 = vmatprep.subr.bf16.mxu0 0
        %1000 = vmatpush2.bf16.msra.mxu0 0
        %1001 = vmatprep.subr.bf16.mxu0 0
        %1002 = vmatpush2.bf16.msra.mxu0 0
        %1003 = vmatprep.subr.bf16.mxu0 0
        %1004 = vmatpush2.bf16.msra.mxu0 0
        %1005 = vmatprep.subr.bf16.mxu0 0
        %1006 = vmatpush2.bf16.msra.mxu0 0
        %1007 = vmatprep.subr.bf16.mxu0 0
        %1008 = vmatpush2.bf16.msra.mxu0 0
        %1009 = vmatprep.subr.bf16.mxu0 0
        %1010 = vmatpush2.bf16.msra.mxu0 0
        %1011 = vmatprep.subr.bf16.mxu0 0
        %1012 = vmatpush2.bf16.msra.mxu0 0
        %1013 = vmatprep.mubr.bf16.mxu0 0
        %1014 = vmatmul.mubr.bf16.gmra.mxu0 %v976
        %v1015 = vpop.f32.mrf.mxu0
        %v1016 = vadd.f32 0.0, %v1015
        %v1017 = vpop.f32.mrf.mxu0
        %v1018 = vpop.f32.mrf.mxu0
        %v1019 = vpop.f32.mrf.mxu0
        %1020 = vdwg.mxu0
        %v1021 = vadd.f32 %v858, %v1016
        %1022 = vrot.lane.b32.xlu0 %v543, 104
        %v1023 = vpop.permute.xlu0 %1022
        %1024 = vrot.lane.b32.xlu0 %v544, 72
        %v1025 = vpop.permute.xlu0 %1024
        %v1027 = vsel %vm548, %v1023, 0
        %v1030 = vsel %vm548, %v1025, 0
        %1032 = vmatprep.subr.bf16.mxu0 0
        %1033 = vmatpush1.bf16.xpose.msra.mxu0 0
        %1034 = vmatprep.subr.bf16.mxu0 0
        %1035 = vmatpush1.bf16.xpose.msra.mxu0 0
        %1036 = vmatprep.subr.bf16.mxu0 0
        %1037 = vmatpush1.bf16.xpose.msra.mxu0 0
        %1038 = vmatprep.subr.bf16.mxu0 0
        %1039 = vmatpush1.bf16.xpose.msra.mxu0 0
        %1040 = vmatprep.subr.bf16.mxu0 0
        %1041 = vmatpush1.bf16.xpose.msra.mxu0 0
        %1042 = vmatprep.subr.bf16.mxu0 0
        %1043 = vmatpush1.bf16.xpose.msra.mxu0 0
        %1044 = vmatprep.subr.bf16.mxu0 0
        %1045 = vmatpush1.bf16.xpose.msra.mxu0 0
        %1046 = vmatprep.subr.bf16.mxu0 0
        %1047 = vmatpush1.bf16.xpose.msra.mxu0 %v1030
        %1048 = vmatprep.subr.bf16.mxu0 0
        %1049 = vmatpush2.bf16.xpose.msra.mxu0 0
        %1050 = vmatprep.subr.bf16.mxu0 0
        %1051 = vmatpush2.bf16.xpose.msra.mxu0 0
        %1052 = vmatprep.subr.bf16.mxu0 0
        %1053 = vmatpush2.bf16.xpose.msra.mxu0 0
        %1054 = vmatprep.subr.bf16.mxu0 0
        %1055 = vmatpush2.bf16.xpose.msra.mxu0 0
        %1056 = vmatprep.subr.bf16.mxu0 0
        %1057 = vmatpush2.bf16.xpose.msra.mxu0 0
        %1058 = vmatprep.subr.bf16.mxu0 0
        %1059 = vmatpush2.bf16.xpose.msra.mxu0 0
        %1060 = vmatprep.subr.bf16.mxu0 0
        %1061 = vmatpush2.bf16.xpose.msra.mxu0 0
        %1062 = vmatprep.subr.bf16.mxu0 0
        %1063 = vmatpush2.bf16.xpose.msra.mxu0 0
        %1064 = vmatprep.mubr.bf16.mxu0 0
        %1065 = vmatmul.mubr.bf16.gmra.mxu0 %v1027
        %v1066 = vpop.f32.mrf.mxu0
        %v1067 = vadd.f32 %v542, %v1066
        %v1068 = vpop.f32.mrf.mxu0
        %v1069 = vpop.f32.mrf.mxu0
        %v1070 = vpop.f32.mrf.mxu0
        %1071 = vdwg.mxu0
        %v1072 = vsel %vm548, %v1067, -inf
        %1073 = vmax.xlane.f32.xlu0 %v1072
        %v1074 = vpop.xlane.xlu0 %1073
        %v1075 = vsub.f32 %v1067, %v1074
        %v1076 = vmul.f32 %v1075, 1.442695
        %v1077 = vpow.pop %v1076
        %v1078 = vsel %vm548, %v1077, 0.0
        %1079 = vadd.xlane.f32.xlu0 %v1078
        %v1080 = vpop.xlane.xlu0 %1079
        %v1081 = vrcp.pop %v1080
        %v1082 = vmul.f32 %v1077, %v1081
        %v1083 = vpack.c.bf16 %v1082, %v1082
        %1084 = vrot.lane.b32.xlu0 %v544, 40
        %v1085 = vpop.permute.xlu0 %1084
        %v1087 = vsel %vm548, %v1083, 0
        %v1090 = vsel %vm612, %v1085, 0
        %1092 = vmatprep.subr.bf16.mxu0 0
        %1093 = vmatpush1.bf16.msra.mxu0 0
        %1094 = vmatprep.subr.bf16.mxu0 0
        %1095 = vmatpush1.bf16.msra.mxu0 0
        %1096 = vmatprep.subr.bf16.mxu0 0
        %1097 = vmatpush1.bf16.msra.mxu0 0
        %1098 = vmatprep.subr.bf16.mxu0 0
        %1099 = vmatpush1.bf16.msra.mxu0 0
        %1100 = vmatprep.subr.bf16.mxu0 0
        %1101 = vmatpush1.bf16.msra.mxu0 0
        %1102 = vmatprep.subr.bf16.mxu0 0
        %1103 = vmatpush1.bf16.msra.mxu0 0
        %1104 = vmatprep.subr.bf16.mxu0 0
        %1105 = vmatpush1.bf16.msra.mxu0 0
        %1106 = vmatprep.subr.bf16.mxu0 0
        %1107 = vmatpush1.bf16.msra.mxu0 %v1090
        %1108 = vmatprep.subr.bf16.mxu0 0
        %1109 = vmatpush2.bf16.msra.mxu0 0
        %1110 = vmatprep.subr.bf16.mxu0 0
        %1111 = vmatpush2.bf16.msra.mxu0 0
        %1112 = vmatprep.subr.bf16.mxu0 0
        %1113 = vmatpush2.bf16.msra.mxu0 0
        %1114 = vmatprep.subr.bf16.mxu0 0
        %1115 = vmatpush2.bf16.msra.mxu0 0
        %1116 = vmatprep.subr.bf16.mxu0 0
        %1117 = vmatpush2.bf16.msra.mxu0 0
        %1118 = vmatprep.subr.bf16.mxu0 0
        %1119 = vmatpush2.bf16.msra.mxu0 0
        %1120 = vmatprep.subr.bf16.mxu0 0
        %1121 = vmatpush2.bf16.msra.mxu0 0
        %1122 = vmatprep.subr.bf16.mxu0 0
        %1123 = vmatpush2.bf16.msra.mxu0 0
        %1124 = vmatprep.mubr.bf16.mxu0 0
        %1125 = vmatmul.mubr.bf16.gmra.mxu0 %v1087
        %v1126 = vpop.f32.mrf.mxu0
        %v1127 = vadd.f32 0.0, %v1126
        %v1128 = vpop.f32.mrf.mxu0
        %v1129 = vpop.f32.mrf.mxu0
        %v1130 = vpop.f32.mrf.mxu0
        %1131 = vdwg.mxu0
        %v1132 = vpack.c.bf16 %v1127, %v1127
        %v1133 = vld [vmem:[%s7 + $0xc] sm:$0xf]
        %v1135 = vsel %vm548, %v1132, 0
        %v1138 = vsel %vm612, %v1133, 0
        %1140 = vmatprep.subr.bf16.mxu0 0
        %1141 = vmatpush1.bf16.msra.mxu0 0
        %1142 = vmatprep.subr.bf16.mxu0 0
        %1143 = vmatpush1.bf16.msra.mxu0 0
        %1144 = vmatprep.subr.bf16.mxu0 0
        %1145 = vmatpush1.bf16.msra.mxu0 0
        %1146 = vmatprep.subr.bf16.mxu0 0
        %1147 = vmatpush1.bf16.msra.mxu0 0
        %1148 = vmatprep.subr.bf16.mxu0 0
        %1149 = vmatpush1.bf16.msra.mxu0 0
        %1150 = vmatprep.subr.bf16.mxu0 0
        %1151 = vmatpush1.bf16.msra.mxu0 0
        %1152 = vmatprep.subr.bf16.mxu0 0
        %1153 = vmatpush1.bf16.msra.mxu0 0
        %1154 = vmatprep.subr.bf16.mxu0 0
        %1155 = vmatpush1.bf16.msra.mxu0 %v1138
        %1156 = vmatprep.subr.bf16.mxu0 0
        %1157 = vmatpush2.bf16.msra.mxu0 0
        %1158 = vmatprep.subr.bf16.mxu0 0
        %1159 = vmatpush2.bf16.msra.mxu0 0
        %1160 = vmatprep.subr.bf16.mxu0 0
        %1161 = vmatpush2.bf16.msra.mxu0 0
        %1162 = vmatprep.subr.bf16.mxu0 0
        %1163 = vmatpush2.bf16.msra.mxu0 0
        %1164 = vmatprep.subr.bf16.mxu0 0
        %1165 = vmatpush2.bf16.msra.mxu0 0
        %1166 = vmatprep.subr.bf16.mxu0 0
        %1167 = vmatpush2.bf16.msra.mxu0 0
        %1168 = vmatprep.subr.bf16.mxu0 0
        %1169 = vmatpush2.bf16.msra.mxu0 0
        %1170 = vmatprep.subr.bf16.mxu0 0
        %1171 = vmatpush2.bf16.msra.mxu0 0
        %1172 = vmatprep.mubr.bf16.mxu0 0
        %1173 = vmatmul.mubr.bf16.gmra.mxu0 %v1135
        %v1174 = vpop.f32.mrf.mxu0
        %v1175 = vadd.f32 0.0, %v1174
        %v1176 = vpop.f32.mrf.mxu0
        %v1177 = vpop.f32.mrf.mxu0
        %v1178 = vpop.f32.mrf.mxu0
        %1179 = vdwg.mxu0
        %v1180 = vadd.f32 %v1021, %v1175
        %1181 = vst.msk [vmem:[#allocation2] sm:$0xff] %vm438, %v1180
        %v1182 = vld [vmem:[#allocation2] sm:$0xff]
        %v1183 = vld [vmem:[%s8] sm:$0x1]
        %v1185 = vlaneseq
        %v1186 = vshrl.u32 %v1185, 7
        %v1187 = vsub.s32 0, %v1186
        %v1188 = vrot.slane %v1183, %v1187
        %v1190 = vadd.f32 %v1182, %v1188
        %v1191 = vadd.f32 %v1190, %v437
        %v1192 = vsel %vm438, %v1191, 0.0
        %1193 = vadd.xlane.f32.xlu0 %v1192
        %v1194 = vpop.xlane.xlu0 %1193
        %v1195 = vmul.f32 %v1194, %v442
        %v1196 = vsub.f32 %v1191, %v1195
        %v1197 = vmul.f32 %v1196, %v1196
        %v1198 = vsel %vm438, %v1197, 0.0
        %1199 = vadd.xlane.f32.xlu0 %v1198
        %v1200 = vpop.xlane.xlu0 %1199
        %v1201 = vmul.f32 %v1200, %v442
        %v1202 = vadd.f32 %v1201, 1e-05
        %v1203 = vrsqrt.pop %v1202
        %v1204 = vmul.f32 %v1196, %v1203
        %v1205 = vld [vmem:[%s3] sm:$0x1]
        %v1207 = vlaneseq
        %v1208 = vshrl.u32 %v1207, 7
        %v1209 = vsub.s32 0, %v1208
        %v1210 = vrot.slane %v1205, %v1209
        %v1212 = vmul.f32 %v1204, %v1210
        %v1213 = vld [vmem:[%s4] sm:$0x1]
        %v1215 = vlaneseq
        %v1216 = vshrl.u32 %v1215, 7
        %v1217 = vsub.s32 0, %v1216
        %v1218 = vrot.slane %v1213, %v1217
        %v1220 = vadd.f32 %v1212, %v1218
        %v1221 = vpack.c.bf16 %v1220, %v1220
        %v1222 = vld [vmem:[%s9] sm:$0xf]
        %v1223 = vld [vmem:[%s9 + $0x4] sm:$0xf]
        %v1224 = vld [vmem:[%s9 + $0x8] sm:$0xf]
        %v1225 = vld [vmem:[%s9 + $0xc] sm:$0xf]
        %v1226 = vld [vmem:[%s10] sm:$0x1]
        %v1228 = vlaneseq
        %v1229 = vshrl.u32 %v1228, 7
        %v1230 = vsub.s32 0, %v1229
        %v1231 = vrot.slane %v1226, %v1230
        %v1237 = vunpack.c.l.b16 %v1222
        %v1238 = vunpack.c.l.b16 %v1223
        %v1239 = vunpack.c.l.b16 %v1224
        %v1240 = vunpack.c.l.b16 %v1225
        %v1241 = vpack.c.b16 %v1238, %v1237
        %v1242 = vpack.c.b16 %v1240, %v1239
        %v1246 = vsel %vm438, %v1221, 0
        %1248 = vmatprep.subr.bf16.mxu0 0
        %1249 = vmatpush1.bf16.msra.mxu0 0
        %1250 = vmatprep.subr.bf16.mxu0 0
        %1251 = vmatpush1.bf16.msra.mxu0 0
        %1252 = vmatprep.subr.bf16.mxu0 0
        %1253 = vmatpush1.bf16.msra.mxu0 0
        %1254 = vmatprep.subr.bf16.mxu0 0
        %1255 = vmatpush1.bf16.msra.mxu0 0
        %1256 = vmatprep.subr.bf16.mxu0 0
        %1257 = vmatpush1.bf16.msra.mxu0 0
        %1258 = vmatprep.subr.bf16.mxu0 0
        %1259 = vmatpush1.bf16.msra.mxu0 0
        %1260 = vmatprep.subr.bf16.mxu0 0
        %1261 = vmatpush1.bf16.msra.mxu0 %v1242
        %1262 = vmatprep.subr.bf16.mxu0 0
        %1263 = vmatpush1.bf16.msra.mxu0 %v1241
        %1264 = vmatprep.subr.bf16.mxu0 0
        %1265 = vmatpush2.bf16.msra.mxu0 0
        %1266 = vmatprep.subr.bf16.mxu0 0
        %1267 = vmatpush2.bf16.msra.mxu0 0
        %1268 = vmatprep.subr.bf16.mxu0 0
        %1269 = vmatpush2.bf16.msra.mxu0 0
        %1270 = vmatprep.subr.bf16.mxu0 0
        %1271 = vmatpush2.bf16.msra.mxu0 0
        %1272 = vmatprep.subr.bf16.mxu0 0
        %1273 = vmatpush2.bf16.msra.mxu0 0
        %1274 = vmatprep.subr.bf16.mxu0 0
        %1275 = vmatpush2.bf16.msra.mxu0 0
        %1276 = vmatprep.subr.bf16.mxu0 0
        %1277 = vmatpush2.bf16.msra.mxu0 0
        %1278 = vmatprep.subr.bf16.mxu0 0
        %1279 = vmatpush2.bf16.msra.mxu0 0
        %1280 = vmatprep.mubr.bf16.mxu0 0
        %1281 = vmatmul.mubr.bf16.gmra.mxu0 %v1246
        %v1282 = vpop.f32.mrf.mxu0
        %v1283 = vadd.f32 %v1231, %v1282
        %v1284 = vpop.f32.mrf.mxu0
        %v1285 = vpop.f32.mrf.mxu0
        %v1286 = vpop.f32.mrf.mxu0
        %1287 = vdwg.mxu0
        %v1288 = vmul.f32 %v1283, 1.702
        %v1289 = vxor.u32 %v1288, 2147483648
        %v1290 = vmul.f32 %v1289, 1.442695
        %v1291 = vpow.pop %v1290
        %v1292 = vadd.f32 %v1291, 1.0
        %v1293 = vrcp.pop %v1292
        %v1294 = vmul.f32 1.0, %v1293
        %v1295 = vpack.c.bf16 %v1294, %v1294
        %v1296 = vld [vmem:[%s11] sm:$0xf]
        %v1297 = vld [vmem:[%s11 + $0x4] sm:$0xf]
        %v1298 = vld [vmem:[%s11 + $0x8] sm:$0xf]
        %v1299 = vld [vmem:[%s11 + $0xc] sm:$0xf]
        %v1300 = vld [vmem:[%s11 + $0x10] sm:$0xf]
        %v1301 = vld [vmem:[%s11 + $0x14] sm:$0xf]
        %v1302 = vld [vmem:[%s11 + $0x18] sm:$0xf]
        %v1303 = vld [vmem:[%s11 + $0x1c] sm:$0xf]
        %v1304 = vld [vmem:[%s11 + $0x20] sm:$0xf]
        %v1305 = vld [vmem:[%s11 + $0x24] sm:$0xf]
        %v1306 = vld [vmem:[%s11 + $0x28] sm:$0xf]
        %v1307 = vld [vmem:[%s11 + $0x2c] sm:$0xf]
        %v1308 = vld [vmem:[%s11 + $0x30] sm:$0xf]
        %v1309 = vld [vmem:[%s11 + $0x34] sm:$0xf]
        %v1310 = vld [vmem:[%s11 + $0x38] sm:$0xf]
        %v1311 = vld [vmem:[%s11 + $0x3c] sm:$0xf]
        %v1312 = vld [vmem:[%s12] sm:$0x1]
        %v1314 = vlaneseq
        %v1315 = vshrl.u32 %v1314, 7
        %v1316 = vsub.s32 0, %v1315
        %v1317 = vrot.slane %v1312, %v1316
        %v1335 = vunpack.c.l.b16 %v1296
        %v1336 = vunpack.c.l.b16 %v1297
        %v1337 = vunpack.c.l.b16 %v1298
        %v1338 = vunpack.c.l.b16 %v1299
        %v1339 = vunpack.c.l.b16 %v1300
        %v1340 = vunpack.c.l.b16 %v1301
        %v1341 = vunpack.c.l.b16 %v1302
        %v1342 = vunpack.c.l.b16 %v1303
        %v1343 = vunpack.c.l.b16 %v1304
        %v1344 = vunpack.c.l.b16 %v1305
        %v1345 = vunpack.c.l.b16 %v1306
        %v1346 = vunpack.c.l.b16 %v1307
        %v1347 = vunpack.c.l.b16 %v1308
        %v1348 = vunpack.c.l.b16 %v1309
        %v1349 = vunpack.c.l.b16 %v1310
        %v1350 = vunpack.c.l.b16 %v1311
        %v1351 = vpack.c.b16 %v1336, %v1335
        %v1352 = vpack.c.b16 %v1338, %v1337
        %v1353 = vpack.c.b16 %v1340, %v1339
        %v1354 = vpack.c.b16 %v1342, %v1341
        %v1355 = vpack.c.b16 %v1344, %v1343
        %v1356 = vpack.c.b16 %v1346, %v1345
        %v1357 = vpack.c.b16 %v1348, %v1347
        %v1358 = vpack.c.b16 %v1350, %v1349
        %1367 = vmatprep.subr.bf16.mxu0 0
        %1368 = vmatpush1.bf16.msra.mxu0 %v1358
        %1369 = vmatprep.subr.bf16.mxu0 0
        %1370 = vmatpush1.bf16.msra.mxu0 %v1357
        %1371 = vmatprep.subr.bf16.mxu0 0
        %1372 = vmatpush1.bf16.msra.mxu0 %v1356
        %1373 = vmatprep.subr.bf16.mxu0 0
        %1374 = vmatpush1.bf16.msra.mxu0 %v1355
        %1375 = vmatprep.subr.bf16.mxu0 0
        %1376 = vmatpush1.bf16.msra.mxu0 %v1354
        %1377 = vmatprep.subr.bf16.mxu0 0
        %1378 = vmatpush1.bf16.msra.mxu0 %v1353
        %1379 = vmatprep.subr.bf16.mxu0 0
        %1380 = vmatpush1.bf16.msra.mxu0 %v1352
        %1381 = vmatprep.subr.bf16.mxu0 0
        %1382 = vmatpush1.bf16.msra.mxu0 %v1351
        %1383 = vmatprep.subr.bf16.mxu0 0
        %1384 = vmatpush2.bf16.msra.mxu0 0
        %1385 = vmatprep.subr.bf16.mxu0 0
        %1386 = vmatpush2.bf16.msra.mxu0 0
        %1387 = vmatprep.subr.bf16.mxu0 0
        %1388 = vmatpush2.bf16.msra.mxu0 0
        %1389 = vmatprep.subr.bf16.mxu0 0
        %1390 = vmatpush2.bf16.msra.mxu0 0
        %1391 = vmatprep.subr.bf16.mxu0 0
        %1392 = vmatpush2.bf16.msra.mxu0 0
        %1393 = vmatprep.subr.bf16.mxu0 0
        %1394 = vmatpush2.bf16.msra.mxu0 0
        %1395 = vmatprep.subr.bf16.mxu0 0
        %1396 = vmatpush2.bf16.msra.mxu0 0
        %1397 = vmatprep.subr.bf16.mxu0 0
        %1398 = vmatpush2.bf16.msra.mxu0 0
        %1399 = vmatprep.mubr.bf16.mxu0 0
        %1400 = vmatmul.mubr.bf16.gmra.mxu0 %v1295
        %v1401 = vpop.f32.mrf.mxu0
        %v1402 = vadd.f32 %v1317, %v1401
        %v1403 = vpop.f32.mrf.mxu0
        %v1404 = vpop.f32.mrf.mxu0
        %v1405 = vpop.f32.mrf.mxu0
        %1406 = vdwg.mxu0
        %v1407 = vadd.f32 %v1402, %v1191
        %1408 = vst.msk [vmem:[%s431] sm:$0xff] %vm438, %v1407
        %s1409 = sand.u32 %s313, 1
        %s1410 = scalar_lea.sflag [#allocation4], %s1409
        %s1411 = sand.u32 %s313, 1
        %s1412 = smul.addr %s1411, 8
        %s1413 = scalar_lea.vmem [#allocation3], %s1412
        // Predicated region
        $region73: #{tpu_custom_call.1} parent=71 // pred_check
          %p1414 = pneg %p323
        $region74: #{tpu_custom_call.1} parent=71 // pred_check_branch
          %1416 = sbr.rel (%p1414) target = $region76
        $region75: #{tpu_custom_call.1} parent=71 // pred_region
          %s1418 = ssub.s32 128, 128
          %1419 = vsyncadd %s1410, %s1418
          %s1420 = smul.addr %s27, 128
          %s1421 = scalar_lea.hbm %s13, %s1420
          %s1423 = sshll.u32 %s1413, 4
          %s1424 = int_to_ptr.vmem [resolvable:$true] %s1423
          %1426 = dma.vmem_to_hbm [thread:$0]  %s1424, 128, %s1421, %s1410
        $region76: #{tpu_custom_call.1} parent=71 // pred_fallthru
          _
      $region72: #{tpu_custom_call.1} parent=5 // pred_fallthru
        _
      %p1427 = scmp.le.s32.totalorder 2, %s22
      // Predicated region
      $region77: #{tpu_custom_call.1} parent=5 // pred_check
        %p1428 = pneg %p1427
      $region78: #{tpu_custom_call.1} parent=5 // pred_check_branch
        %1430 = sbr.rel (%p1428) target = $region80
      $region79: #{tpu_custom_call.1} parent=5 // pred_region
        %s1431 = ssub.s32 %s22, 2
        // Predicated region
        $region81: #{tpu_custom_call.1} parent=79 // pred_check
          %p1432 = pneg %p329
        $region82: #{tpu_custom_call.1} parent=79 // pred_check_branch
          %1434 = sbr.rel (%p1432) target = $region84
        $region83: #{tpu_custom_call.1} parent=79 // pred_region
          %s1435 = sand.u32 %s314, 1
          %s1436 = scalar_lea.sflag [#allocation4], %s1435
          %s1437 = sand.u32 %s314, 1
          %s1438 = smul.addr %s1437, 8
          %s1439 = scalar_lea.vmem [#allocation3], %s1438
          %1440 = dma.done %s1436, 128
        $region84: #{tpu_custom_call.1} parent=79 // pred_fallthru
          _
      $region80: #{tpu_custom_call.1} parent=5 // pred_fallthru
        _
    $region6: #{tpu_custom_call.1} parent=1 // loop_footer
      %s26 = sadd.s32 1, %s22
    $region7: #{tpu_custom_call.1} parent=1 // loop_footer_branch
      %21 = sbr.rel target = $region3
    $region8: #{tpu_custom_call.1} parent=1 // loop_exit
      _
    %1441 = vsyncpa [#allocation4], 1
    %s1442 = scalar_lea.sflag [#allocation4], 1
    %1443 = vsyncpa %s1442, 1

</llo_original>
